<compile_context>
chip_gen: v6e
topology: v6e:2x2x1
jax: 0.10.0
libtpu: 0.0.40
codegen_flags: <defaults>
</compile_context>

<pallas_src>
import math

import jax
import jax.numpy as jnp
import numpy as np
from jax.experimental import pallas as pl
from jax.experimental.pallas import tpu as pltpu

MAX_BLOCK_B = 256  # batch rows per grid step (multiple of 16)


def _round_up(n, m):
    return ((n + m - 1) // m) * m


def _gelu(x):
    # tanh-approximate GELU (EUP tanh). ~1e-3 deviation vs torch's exact erf GELU.
    c = 0.7978845608028654  # sqrt(2/pi)
    return 0.5 * x * (1.0 + jnp.tanh(c * (x + 0.044715 * x * x * x)))


# ----------------------------------------------------------------------------- kernel
def _fused_kernel(p1_ref, w1_ref, w2_ref, wfc1_ref, wfc2_ref, wfc3_ref, b_ref, o_ref):
    """Fused conv1+GELU+pool -> conv2+GELU -> fc1/fc2/fc3 for one batch block.

    p1_ref : (6*Bb, 192) bf16  depth-window patches, rows ordered (d, b), K = (kd,i,j)
    w1_ref : (4, 192, 144) bf16 conv1 weight, one slab per 2x2 pool position,
                                N lanes = (h', w', c)  (9 pooled positions x 16 ch)
    w2_ref : (6, 144, 128) bf16 conv2 weight per pooled depth d; N lanes = (dp, c_out)
    wfc1   : (128, 128) bf16    fc1 weight permuted for (d, c)-ordered features
    wfc2   : (128, 64)  bf16
    wfc3   : (1, 64)    f32
    b_ref  : (1, 576)   f32     packed biases [conv1(144)+pad | conv2(128) | fc1 | fc2]
    o_ref  : (1, Bb)    f32     lane-dense fc3 output (bias added in wrapper)
    """
    bb = o_ref.shape[1]          # batch rows in this block
    f32, bf16 = jnp.float32, jnp.bfloat16

    # ---- stage 1: conv1 (+bias, GELU) and 2x2 max-pool folded over 4 weight slabs
    b1 = b_ref[:, 0:144]
    pooled = None
    for pp in range(4):
        z = jnp.dot(p1_ref[...], w1_ref[pp], preferred_element_type=f32)  # (6*Bb,144)
        a = _gelu((z + b1).astype(bf16))        # bf16 elementwise (v6e/v7x EUP/VALU)
        pooled = a if pooled is None else jnp.maximum(pooled, a)
    # pooled: (6*Bb, 144) bf16, rows (d, b), lanes (h', w', c)

    # ---- stage 2: conv2 (depth window of 3) + flatten, as 6 accumulating GEMMs whose
    # block weight already emits output lanes in (dp, c_out) order.
    acc = jnp.dot(pooled[0:bb], w2_ref[0], preferred_element_type=f32)     # (Bb, 128)
    for d in range(1, 6):
        acc = acc + jnp.dot(pooled[d * bb:(d + 1) * bb], w2_ref[d],
                            preferred_element_type=f32)
    h0 = _gelu((acc + b_ref[:, 256:384]).astype(bf16))                     # (Bb, 128)

    # ---- fc stack (dropout = identity at inference)
    h1 = _gelu((jnp.dot(h0, wfc1_ref[...], preferred_element_type=f32)
                + b_ref[:, 384:512]).astype(bf16))                         # (Bb, 128)
    h2 = _gelu(jnp.dot(h1, wfc2_ref[...], preferred_element_type=f32)
               + b_ref[:, 512:576])                                        # (Bb, 64) f32

    # fc3 as a single (1,64)x(64,Bb) pass -> lane-dense (1, Bb) output block
    o_ref[...] = jnp.dot(wfc3_ref[...], h2.T, preferred_element_type=f32)


# ----------------------------------------------------------------------------- params
def init_params(key):
    """Deterministic synthetic params with torch-default-like U(-1/sqrt(fan_in), .)."""
    ks = jax.random.split(key, 10)

    def u(k, shape, fan_in):
        b = 1.0 / math.sqrt(fan_in)
        return jax.random.uniform(k, shape, jnp.float32, -b, b)

    return dict(
        conv1_w=u(ks[0], (16, 1, 3, 3, 3), 27),
        conv1_b=u(ks[1], (16,), 27),
        conv2_w=u(ks[2], (32, 16, 3, 3, 3), 16 * 27),
        conv2_b=u(ks[3], (32,), 16 * 27),
        fc1_w=u(ks[4], (128, 128), 128),
        fc1_b=u(ks[5], (128,), 128),
        fc2_w=u(ks[6], (64, 128), 128),
        fc2_b=u(ks[7], (64,), 128),
        fc3_w=u(ks[8], (1, 64), 64),
        fc3_b=u(ks[9], (1,), 64),
    )


# ----------------------------------------------------------------------------- forward
@jax.jit
def feature_v3_forward(x, params):
    """x: (B, 1, 8, 8, 8) float32 (NCDHW, signal_window_size=8). Returns (B, 1) f32."""
    f32 = jnp.float32
    B = x.shape[0]
    xs = x[:, 0].astype(f32)                                   # (B, 8, 8, 8)

    # ---- batch blocking: multiple of 16 (bf16 sublane tiles), >= 2 grid steps when
    # the batch allows it so the "parallel" axis can shard across v7x's 2 TCs.
    if B >= 32:
        Bb = min(MAX_BLOCK_B, _round_up((B + 1) // 2, 16))
    else:
        Bb = _round_up(B, 16)
    B_pad = _round_up(B, Bb)
    nb = B_pad // Bb

    # ---- glue: depth-window patches (6 rows/sample, K = 3*8*8 = 192), rows (blk,d,b)
    dwin = jnp.stack([xs[:, d:d + 3].reshape(B, 192) for d in range(6)], axis=0)
    if B_pad != B:
        dwin = jnp.pad(dwin, ((0, 0), (0, B_pad - B), (0, 0)))
    p1 = (dwin.reshape(6, nb, Bb, 192)
              .transpose(1, 0, 2, 3)
              .reshape(nb * 6 * Bb, 192)
              .astype(jnp.bfloat16))

    # ---- glue: conv1 weight with pool positions folded into 4 RHS slabs.
    # base[kd, i, j, h', w', c] nonzero for i in [2h', 2h'+3), j in [2w', 2w'+3).
    w1t = params["conv1_w"].astype(f32)[:, 0].transpose(1, 2, 3, 0)   # (kd,kh,kw,c)
    base = jnp.zeros((3, 7, 7, 3, 3, 16), f32)
    for hp in range(3):
        for wp in range(3):
            base = base.at[:, 2 * hp:2 * hp + 3, 2 * wp:2 * wp + 3, hp, wp, :].set(w1t)
    slabs = [jnp.pad(base, ((0, 0), (pi, 1 - pi), (pj, 1 - pj), (0, 0), (0, 0), (0, 0)))
             for pi in range(2) for pj in range(2)]                   # shift by pool pos
    w1m = jnp.stack(slabs, axis=0).reshape(4, 192, 144).astype(jnp.bfloat16)

    # ---- glue: conv2 weight per pooled depth d; K lanes (h',w',c_in), N (dp, c_out)
    w2t = params["conv2_w"].astype(f32).transpose(2, 3, 4, 1, 0)      # (kd,kh,kw,ci,co)
    w2big = jnp.zeros((6, 3, 3, 16, 4, 32), f32)                      # (d,h',w',ci,dp,co)
    for dp in range(4):
        w2big = w2big.at[dp:dp + 3, :, :, :, dp, :].set(w2t)
    w2m = w2big.reshape(6, 144, 128).astype(jnp.bfloat16)

    # fc1 weight permuted so input feature order (dp*32 + c) reproduces torch.flatten's
    # (c*4 + dp) ordering
    wfc1 = (params["fc1_w"].astype(f32).T.reshape(32, 4, 128)
            .transpose(1, 0, 2).reshape(128, 128).astype(jnp.bfloat16))
    wfc2 = params["fc2_w"].astype(f32).T.astype(jnp.bfloat16)         # (128, 64)
    wfc3 = params["fc3_w"].astype(f32)                                # (1, 64)

    # packed biases (1, 576): [conv1 slab 144 + 112 pad | conv2 128 | fc1 128 | fc2 64]
    bias_packed = jnp.concatenate([
        jnp.tile(params["conv1_b"].astype(f32), 9),                   # lanes (h',w',c)
        jnp.zeros((112,), f32),
        jnp.tile(params["conv2_b"].astype(f32), 4),                   # lanes (dp,c_out)
        params["fc1_b"].astype(f32),
        params["fc2_b"].astype(f32),
    ]).reshape(1, 576)

    flops = 2 * B_pad * (4 * 6 * 192 * 144 + 6 * 144 * 128 + 128 * 128 + 128 * 64 + 64)
    transcendentals = B_pad * (4 * 6 * 144 + 128 + 128 + 64)
    bytes_accessed = (p1.size * 2 + w1m.size * 2 + w2m.size * 2 + wfc1.size * 2
                      + wfc2.size * 2 + wfc3.size * 4 + bias_packed.size * 4 + B_pad * 4)

    # VMEM: double-buffered inputs/outputs + the in-kernel intermediates (4x margin)
    blk_bytes = (2 * (6 * Bb * 192 * 2 + w1m.size * 2 + w2m.size * 2 + wfc1.size * 2
                      + wfc2.size * 2 + wfc3.size * 4 + bias_packed.size * 4 + Bb * 4)
                 + 6 * Bb * 144 * 4          # f32 conv1 slab
                 + 2 * 6 * Bb * 144 * 2      # bf16 GELU slab + running pool max
                 + Bb * 128 * 4)             # conv2 / fc accumulators
    vmem_limit = int(min(48 * 1024 * 1024, max(16 * 1024 * 1024, 4 * blk_bytes)))

    const2 = lambda i: (0, 0)    # noqa: E731  (grid-invariant weight blocks)
    const3 = lambda i: (0, 0, 0)  # noqa: E731

    out = pl.pallas_call(
        _fused_kernel,
        out_shape=jax.ShapeDtypeStruct((nb, Bb), jnp.float32),
        grid=(nb,),
        in_specs=[
            pl.BlockSpec((6 * Bb, 192), lambda i: (i, 0)),   # depth-window patches
            pl.BlockSpec((4, 192, 144), const3),             # conv1 weight (4 pool slabs)
            pl.BlockSpec((6, 144, 128), const3),             # conv2 weight (per depth)
            pl.BlockSpec((128, 128), const2),                # fc1 weight (permuted)
            pl.BlockSpec((128, 64), const2),                 # fc2 weight
            pl.BlockSpec((1, 64), const2),                   # fc3 weight
            pl.BlockSpec((1, 576), const2),                  # packed biases
        ],
        out_specs=pl.BlockSpec((1, Bb), lambda i: (i, 0)),   # lane-dense output block
        compiler_params=pltpu.CompilerParams(
            dimension_semantics=("parallel",),
            vmem_limit_bytes=vmem_limit,
        ),
        cost_estimate=pl.CostEstimate(
            flops=flops, transcendentals=transcendentals,
            bytes_accessed=bytes_accessed),
    )(p1, w1m, w2m, wfc1, wfc2, wfc3, bias_packed)

    return out.reshape(B_pad, 1)[:B] + params["fc3_b"].astype(f32)


# ----------------------------------------------------------------------------- reference
def _reference_forward(x, params):
    """Plain-JAX (f32) reference of the module forward (same tanh-GELU)."""
    f32 = jnp.float32
    a = jax.lax.conv_general_dilated(
        x.astype(f32), params["conv1_w"].astype(f32), (1, 1, 1), "VALID",
        dimension_numbers=("NCDHW", "OIDHW", "NCDHW"))
    a = _gelu(a + params["conv1_b"].reshape(1, 16, 1, 1, 1))
    a = jax.lax.reduce_window(a, -jnp.inf, jax.lax.max,
                              (1, 1, 1, 2, 2), (1, 1, 1, 2, 2), "VALID")
    a = jax.lax.conv_general_dilated(
        a, params["conv2_w"].astype(f32), (1, 1, 1), "VALID",
        dimension_numbers=("NCDHW", "OIDHW", "NCDHW"))
    a = _gelu(a + params["conv2_b"].reshape(1, 32, 1, 1, 1))
    h = a.reshape(x.shape[0], -1)                             # torch.flatten (c*4+d)
    h = _gelu(h @ params["fc1_w"].astype(f32).T + params["fc1_b"])
    h = _gelu(h @ params["fc2_w"].astype(f32).T + params["fc2_b"])
    return h @ params["fc3_w"].astype(f32).T + params["fc3_b"]


# ----------------------------------------------------------------------------- main
if __name__ == "__main__":
    key = jax.random.PRNGKey(0)
    kx, kp = jax.random.split(key)
    # batch=2, signal_window_size=8 -> input_features = 32*4 = 128 (matches module)
    x = jax.random.normal(kx, (2, 1, 8, 8, 8), jnp.float32)
    params = init_params(kp)

    y = jax.block_until_ready(feature_v3_forward(x, params))
    assert y.shape == (2, 1) and y.dtype == jnp.float32

    # loose tolerance: kernel uses bf16 matmul operands / bf16 elementwise
    y_ref = jax.block_until_ready(_reference_forward(x, params))
    np.testing.assert_allclose(np.asarray(y), np.asarray(y_ref), rtol=0.05, atol=0.05)

    print("KERNEL_OK")
</pallas_src>

<mosaic_0001>
module attributes {stable_mosaic.version = 11 : i64} {
  func.func @_fused_kernel(%arg0: i32, %arg1: memref<96x192xbf16, #tpu.memory_space<vmem>>, %arg2: memref<4x192x144xbf16, #tpu.memory_space<vmem>>, %arg3: memref<6x144x128xbf16, #tpu.memory_space<vmem>>, %arg4: memref<128x128xbf16, #tpu.memory_space<vmem>>, %arg5: memref<128x64xbf16, #tpu.memory_space<vmem>>, %arg6: memref<1x64xf32, #tpu.memory_space<vmem>>, %arg7: memref<1x576xf32, #tpu.memory_space<vmem>>, %arg8: memref<1x16xf32, #tpu.memory_space<vmem>>) attributes {dimension_semantics = [#tpu.dimension_semantics<parallel>], iteration_bounds = array<i64: 1>, scalar_prefetch = 0 : i64, scratch_operands = 0 : i64, tpu.core_type = #tpu.core_type<tc>, window_params = [{transform_indices = @transform_0, window_bounds = array<i64: 96, 192>}, {pipeline_mode = #tpu.pipeline_mode<synchronous>, transform_indices = @transform_1, window_bounds = array<i64: 4, 192, 144>}, {pipeline_mode = #tpu.pipeline_mode<synchronous>, transform_indices = @transform_2, window_bounds = array<i64: 6, 144, 128>}, {pipeline_mode = #tpu.pipeline_mode<synchronous>, transform_indices = @transform_3, window_bounds = array<i64: 128, 128>}, {pipeline_mode = #tpu.pipeline_mode<synchronous>, transform_indices = @transform_4, window_bounds = array<i64: 128, 64>}, {pipeline_mode = #tpu.pipeline_mode<synchronous>, transform_indices = @transform_5, window_bounds = array<i64: 1, 64>}, {pipeline_mode = #tpu.pipeline_mode<synchronous>, transform_indices = @transform_6, window_bounds = array<i64: 1, 576>}, {transform_indices = @transform_7, window_bounds = array<i64: 1, 16>}]} {
    %c0 = arith.constant 0 : index
    %c0_0 = arith.constant 0 : index
    %0 = vector.load %arg7[%c0, %c0_0] : memref<1x576xf32, #tpu.memory_space<vmem>>, vector<1x144xf32>
    %c0_1 = arith.constant 0 : index
    %c0_2 = arith.constant 0 : index
    %1 = vector.load %arg1[%c0_1, %c0_2] : memref<96x192xbf16, #tpu.memory_space<vmem>>, vector<96x192xbf16>
    %c0_3 = arith.constant 0 : index
    %c0_4 = arith.constant 0 : index
    %c0_5 = arith.constant 0 : index
    %2 = vector.load %arg2[%c0_3, %c0_4, %c0_5] : memref<4x192x144xbf16, #tpu.memory_space<vmem>>, vector<1x192x144xbf16>
    %3 = vector.shape_cast %2 : vector<1x192x144xbf16> to vector<192x144xbf16>
    %cst = arith.constant dense<0.000000e+00> : vector<96x144xf32>
    %4 = tpu.matmul %1, %3, %cst {dimension_numbers = #tpu.dot_dimension_numbers<[1], [0], [0], [1], [0, 0, 1, 1], [], []>} : vector<96x192xbf16>, vector<192x144xbf16>, vector<96x144xf32> -> vector<96x144xf32>
    %5 = vector.broadcast %0 : vector<1x144xf32> to vector<96x144xf32>
    %6 = arith.addf %4, %5 : vector<96x144xf32>
    %7 = arith.truncf %6 : vector<96x144xf32> to vector<96x144xbf16>
    %cst_6 = arith.constant 5.000000e-01 : bf16
    %8 = vector.broadcast %cst_6 : bf16 to vector<96x144xbf16>
    %9 = arith.mulf %8, %7 : vector<96x144xbf16>
    %cst_7 = arith.constant 4.467770e-02 : bf16
    %10 = vector.broadcast %cst_7 : bf16 to vector<96x144xbf16>
    %11 = arith.mulf %10, %7 : vector<96x144xbf16>
    %12 = arith.mulf %11, %7 : vector<96x144xbf16>
    %13 = arith.mulf %12, %7 : vector<96x144xbf16>
    %14 = arith.addf %7, %13 : vector<96x144xbf16>
    %cst_8 = arith.constant 7.968750e-01 : bf16
    %15 = vector.broadcast %cst_8 : bf16 to vector<96x144xbf16>
    %16 = arith.mulf %15, %14 : vector<96x144xbf16>
    %17 = math.tanh %16 : vector<96x144xbf16>
    %cst_9 = arith.constant 1.000000e+00 : bf16
    %18 = vector.broadcast %cst_9 : bf16 to vector<96x144xbf16>
    %19 = arith.addf %18, %17 : vector<96x144xbf16>
    %20 = arith.mulf %9, %19 : vector<96x144xbf16>
    %c0_10 = arith.constant 0 : index
    %c0_11 = arith.constant 0 : index
    %21 = vector.load %arg1[%c0_10, %c0_11] : memref<96x192xbf16, #tpu.memory_space<vmem>>, vector<96x192xbf16>
    %c1 = arith.constant 1 : index
    %c0_12 = arith.constant 0 : index
    %c0_13 = arith.constant 0 : index
    %22 = vector.load %arg2[%c1, %c0_12, %c0_13] : memref<4x192x144xbf16, #tpu.memory_space<vmem>>, vector<1x192x144xbf16>
    %23 = vector.shape_cast %22 : vector<1x192x144xbf16> to vector<192x144xbf16>
    %cst_14 = arith.constant dense<0.000000e+00> : vector<96x144xf32>
    %24 = tpu.matmul %21, %23, %cst_14 {dimension_numbers = #tpu.dot_dimension_numbers<[1], [0], [0], [1], [0, 0, 1, 1], [], []>} : vector<96x192xbf16>, vector<192x144xbf16>, vector<96x144xf32> -> vector<96x144xf32>
    %25 = vector.broadcast %0 : vector<1x144xf32> to vector<96x144xf32>
    %26 = arith.addf %24, %25 : vector<96x144xf32>
    %27 = arith.truncf %26 : vector<96x144xf32> to vector<96x144xbf16>
    %cst_15 = arith.constant 5.000000e-01 : bf16
    %28 = vector.broadcast %cst_15 : bf16 to vector<96x144xbf16>
    %29 = arith.mulf %28, %27 : vector<96x144xbf16>
    %cst_16 = arith.constant 4.467770e-02 : bf16
    %30 = vector.broadcast %cst_16 : bf16 to vector<96x144xbf16>
    %31 = arith.mulf %30, %27 : vector<96x144xbf16>
    %32 = arith.mulf %31, %27 : vector<96x144xbf16>
    %33 = arith.mulf %32, %27 : vector<96x144xbf16>
    %34 = arith.addf %27, %33 : vector<96x144xbf16>
    %cst_17 = arith.constant 7.968750e-01 : bf16
    %35 = vector.broadcast %cst_17 : bf16 to vector<96x144xbf16>
    %36 = arith.mulf %35, %34 : vector<96x144xbf16>
    %37 = math.tanh %36 : vector<96x144xbf16>
    %cst_18 = arith.constant 1.000000e+00 : bf16
    %38 = vector.broadcast %cst_18 : bf16 to vector<96x144xbf16>
    %39 = arith.addf %38, %37 : vector<96x144xbf16>
    %40 = arith.mulf %29, %39 : vector<96x144xbf16>
    %41 = arith.maximumf %20, %40 : vector<96x144xbf16>
    %c0_19 = arith.constant 0 : index
    %c0_20 = arith.constant 0 : index
    %42 = vector.load %arg1[%c0_19, %c0_20] : memref<96x192xbf16, #tpu.memory_space<vmem>>, vector<96x192xbf16>
    %c2 = arith.constant 2 : index
    %c0_21 = arith.constant 0 : index
    %c0_22 = arith.constant 0 : index
    %43 = vector.load %arg2[%c2, %c0_21, %c0_22] : memref<4x192x144xbf16, #tpu.memory_space<vmem>>, vector<1x192x144xbf16>
    %44 = vector.shape_cast %43 : vector<1x192x144xbf16> to vector<192x144xbf16>
    %cst_23 = arith.constant dense<0.000000e+00> : vector<96x144xf32>
    %45 = tpu.matmul %42, %44, %cst_23 {dimension_numbers = #tpu.dot_dimension_numbers<[1], [0], [0], [1], [0, 0, 1, 1], [], []>} : vector<96x192xbf16>, vector<192x144xbf16>, vector<96x144xf32> -> vector<96x144xf32>
    %46 = vector.broadcast %0 : vector<1x144xf32> to vector<96x144xf32>
    %47 = arith.addf %45, %46 : vector<96x144xf32>
    %48 = arith.truncf %47 : vector<96x144xf32> to vector<96x144xbf16>
    %cst_24 = arith.constant 5.000000e-01 : bf16
    %49 = vector.broadcast %cst_24 : bf16 to vector<96x144xbf16>
    %50 = arith.mulf %49, %48 : vector<96x144xbf16>
    %cst_25 = arith.constant 4.467770e-02 : bf16
    %51 = vector.broadcast %cst_25 : bf16 to vector<96x144xbf16>
    %52 = arith.mulf %51, %48 : vector<96x144xbf16>
    %53 = arith.mulf %52, %48 : vector<96x144xbf16>
    %54 = arith.mulf %53, %48 : vector<96x144xbf16>
    %55 = arith.addf %48, %54 : vector<96x144xbf16>
    %cst_26 = arith.constant 7.968750e-01 : bf16
    %56 = vector.broadcast %cst_26 : bf16 to vector<96x144xbf16>
    %57 = arith.mulf %56, %55 : vector<96x144xbf16>
    %58 = math.tanh %57 : vector<96x144xbf16>
    %cst_27 = arith.constant 1.000000e+00 : bf16
    %59 = vector.broadcast %cst_27 : bf16 to vector<96x144xbf16>
    %60 = arith.addf %59, %58 : vector<96x144xbf16>
    %61 = arith.mulf %50, %60 : vector<96x144xbf16>
    %62 = arith.maximumf %41, %61 : vector<96x144xbf16>
    %c0_28 = arith.constant 0 : index
    %c0_29 = arith.constant 0 : index
    %63 = vector.load %arg1[%c0_28, %c0_29] : memref<96x192xbf16, #tpu.memory_space<vmem>>, vector<96x192xbf16>
    %c3 = arith.constant 3 : index
    %c0_30 = arith.constant 0 : index
    %c0_31 = arith.constant 0 : index
    %64 = vector.load %arg2[%c3, %c0_30, %c0_31] : memref<4x192x144xbf16, #tpu.memory_space<vmem>>, vector<1x192x144xbf16>
    %65 = vector.shape_cast %64 : vector<1x192x144xbf16> to vector<192x144xbf16>
    %cst_32 = arith.constant dense<0.000000e+00> : vector<96x144xf32>
    %66 = tpu.matmul %63, %65, %cst_32 {dimension_numbers = #tpu.dot_dimension_numbers<[1], [0], [0], [1], [0, 0, 1, 1], [], []>} : vector<96x192xbf16>, vector<192x144xbf16>, vector<96x144xf32> -> vector<96x144xf32>
    %67 = vector.broadcast %0 : vector<1x144xf32> to vector<96x144xf32>
    %68 = arith.addf %66, %67 : vector<96x144xf32>
    %69 = arith.truncf %68 : vector<96x144xf32> to vector<96x144xbf16>
    %cst_33 = arith.constant 5.000000e-01 : bf16
    %70 = vector.broadcast %cst_33 : bf16 to vector<96x144xbf16>
    %71 = arith.mulf %70, %69 : vector<96x144xbf16>
    %cst_34 = arith.constant 4.467770e-02 : bf16
    %72 = vector.broadcast %cst_34 : bf16 to vector<96x144xbf16>
    %73 = arith.mulf %72, %69 : vector<96x144xbf16>
    %74 = arith.mulf %73, %69 : vector<96x144xbf16>
    %75 = arith.mulf %74, %69 : vector<96x144xbf16>
    %76 = arith.addf %69, %75 : vector<96x144xbf16>
    %cst_35 = arith.constant 7.968750e-01 : bf16
    %77 = vector.broadcast %cst_35 : bf16 to vector<96x144xbf16>
    %78 = arith.mulf %77, %76 : vector<96x144xbf16>
    %79 = math.tanh %78 : vector<96x144xbf16>
    %cst_36 = arith.constant 1.000000e+00 : bf16
    %80 = vector.broadcast %cst_36 : bf16 to vector<96x144xbf16>
    %81 = arith.addf %80, %79 : vector<96x144xbf16>
    %82 = arith.mulf %71, %81 : vector<96x144xbf16>
    %83 = arith.maximumf %62, %82 : vector<96x144xbf16>
    %84 = vector.extract_strided_slice %83 {offsets = [0, 0], sizes = [16, 144], strides = [1, 1]} : vector<96x144xbf16> to vector<16x144xbf16>
    %c0_37 = arith.constant 0 : index
    %c0_38 = arith.constant 0 : index
    %c0_39 = arith.constant 0 : index
    %85 = vector.load %arg3[%c0_37, %c0_38, %c0_39] : memref<6x144x128xbf16, #tpu.memory_space<vmem>>, vector<1x144x128xbf16>
    %86 = vector.shape_cast %85 : vector<1x144x128xbf16> to vector<144x128xbf16>
    %cst_40 = arith.constant dense<0.000000e+00> : vector<16x128xf32>
    %87 = tpu.matmul %84, %86, %cst_40 {dimension_numbers = #tpu.dot_dimension_numbers<[1], [0], [0], [1], [0, 0, 1, 1], [], []>} : vector<16x144xbf16>, vector<144x128xbf16>, vector<16x128xf32> -> vector<16x128xf32>
    %88 = vector.extract_strided_slice %83 {offsets = [16, 0], sizes = [16, 144], strides = [1, 1]} : vector<96x144xbf16> to vector<16x144xbf16>
    %c1_41 = arith.constant 1 : index
    %c0_42 = arith.constant 0 : index
    %c0_43 = arith.constant 0 : index
    %89 = vector.load %arg3[%c1_41, %c0_42, %c0_43] : memref<6x144x128xbf16, #tpu.memory_space<vmem>>, vector<1x144x128xbf16>
    %90 = vector.shape_cast %89 : vector<1x144x128xbf16> to vector<144x128xbf16>
    %cst_44 = arith.constant dense<0.000000e+00> : vector<16x128xf32>
    %91 = tpu.matmul %88, %90, %cst_44 {dimension_numbers = #tpu.dot_dimension_numbers<[1], [0], [0], [1], [0, 0, 1, 1], [], []>} : vector<16x144xbf16>, vector<144x128xbf16>, vector<16x128xf32> -> vector<16x128xf32>
    %92 = arith.addf %87, %91 : vector<16x128xf32>
    %93 = vector.extract_strided_slice %83 {offsets = [32, 0], sizes = [16, 144], strides = [1, 1]} : vector<96x144xbf16> to vector<16x144xbf16>
    %c2_45 = arith.constant 2 : index
    %c0_46 = arith.constant 0 : index
    %c0_47 = arith.constant 0 : index
    %94 = vector.load %arg3[%c2_45, %c0_46, %c0_47] : memref<6x144x128xbf16, #tpu.memory_space<vmem>>, vector<1x144x128xbf16>
    %95 = vector.shape_cast %94 : vector<1x144x128xbf16> to vector<144x128xbf16>
    %cst_48 = arith.constant dense<0.000000e+00> : vector<16x128xf32>
    %96 = tpu.matmul %93, %95, %cst_48 {dimension_numbers = #tpu.dot_dimension_numbers<[1], [0], [0], [1], [0, 0, 1, 1], [], []>} : vector<16x144xbf16>, vector<144x128xbf16>, vector<16x128xf32> -> vector<16x128xf32>
    %97 = arith.addf %92, %96 : vector<16x128xf32>
    %98 = vector.extract_strided_slice %83 {offsets = [48, 0], sizes = [16, 144], strides = [1, 1]} : vector<96x144xbf16> to vector<16x144xbf16>
    %c3_49 = arith.constant 3 : index
    %c0_50 = arith.constant 0 : index
    %c0_51 = arith.constant 0 : index
    %99 = vector.load %arg3[%c3_49, %c0_50, %c0_51] : memref<6x144x128xbf16, #tpu.memory_space<vmem>>, vector<1x144x128xbf16>
    %100 = vector.shape_cast %99 : vector<1x144x128xbf16> to vector<144x128xbf16>
    %cst_52 = arith.constant dense<0.000000e+00> : vector<16x128xf32>
    %101 = tpu.matmul %98, %100, %cst_52 {dimension_numbers = #tpu.dot_dimension_numbers<[1], [0], [0], [1], [0, 0, 1, 1], [], []>} : vector<16x144xbf16>, vector<144x128xbf16>, vector<16x128xf32> -> vector<16x128xf32>
    %102 = arith.addf %97, %101 : vector<16x128xf32>
    %103 = vector.extract_strided_slice %83 {offsets = [64, 0], sizes = [16, 144], strides = [1, 1]} : vector<96x144xbf16> to vector<16x144xbf16>
    %c4 = arith.constant 4 : index
    %c0_53 = arith.constant 0 : index
    %c0_54 = arith.constant 0 : index
    %104 = vector.load %arg3[%c4, %c0_53, %c0_54] : memref<6x144x128xbf16, #tpu.memory_space<vmem>>, vector<1x144x128xbf16>
    %105 = vector.shape_cast %104 : vector<1x144x128xbf16> to vector<144x128xbf16>
    %cst_55 = arith.constant dense<0.000000e+00> : vector<16x128xf32>
    %106 = tpu.matmul %103, %105, %cst_55 {dimension_numbers = #tpu.dot_dimension_numbers<[1], [0], [0], [1], [0, 0, 1, 1], [], []>} : vector<16x144xbf16>, vector<144x128xbf16>, vector<16x128xf32> -> vector<16x128xf32>
    %107 = arith.addf %102, %106 : vector<16x128xf32>
    %108 = vector.extract_strided_slice %83 {offsets = [80, 0], sizes = [16, 144], strides = [1, 1]} : vector<96x144xbf16> to vector<16x144xbf16>
    %c5 = arith.constant 5 : index
    %c0_56 = arith.constant 0 : index
    %c0_57 = arith.constant 0 : index
    %109 = vector.load %arg3[%c5, %c0_56, %c0_57] : memref<6x144x128xbf16, #tpu.memory_space<vmem>>, vector<1x144x128xbf16>
    %110 = vector.shape_cast %109 : vector<1x144x128xbf16> to vector<144x128xbf16>
    %cst_58 = arith.constant dense<0.000000e+00> : vector<16x128xf32>
    %111 = tpu.matmul %108, %110, %cst_58 {dimension_numbers = #tpu.dot_dimension_numbers<[1], [0], [0], [1], [0, 0, 1, 1], [], []>} : vector<16x144xbf16>, vector<144x128xbf16>, vector<16x128xf32> -> vector<16x128xf32>
    %112 = arith.addf %107, %111 : vector<16x128xf32>
    %c0_59 = arith.constant 0 : index
    %c256 = arith.constant 256 : index
    %113 = vector.load %arg7[%c0_59, %c256] : memref<1x576xf32, #tpu.memory_space<vmem>>, vector<1x128xf32>
    %114 = vector.broadcast %113 : vector<1x128xf32> to vector<16x128xf32>
    %115 = arith.addf %112, %114 : vector<16x128xf32>
    %116 = arith.truncf %115 : vector<16x128xf32> to vector<16x128xbf16>
    %cst_60 = arith.constant 5.000000e-01 : bf16
    %117 = vector.broadcast %cst_60 : bf16 to vector<16x128xbf16>
    %118 = arith.mulf %117, %116 : vector<16x128xbf16>
    %cst_61 = arith.constant 4.467770e-02 : bf16
    %119 = vector.broadcast %cst_61 : bf16 to vector<16x128xbf16>
    %120 = arith.mulf %119, %116 : vector<16x128xbf16>
    %121 = arith.mulf %120, %116 : vector<16x128xbf16>
    %122 = arith.mulf %121, %116 : vector<16x128xbf16>
    %123 = arith.addf %116, %122 : vector<16x128xbf16>
    %cst_62 = arith.constant 7.968750e-01 : bf16
    %124 = vector.broadcast %cst_62 : bf16 to vector<16x128xbf16>
    %125 = arith.mulf %124, %123 : vector<16x128xbf16>
    %126 = math.tanh %125 : vector<16x128xbf16>
    %cst_63 = arith.constant 1.000000e+00 : bf16
    %127 = vector.broadcast %cst_63 : bf16 to vector<16x128xbf16>
    %128 = arith.addf %127, %126 : vector<16x128xbf16>
    %129 = arith.mulf %118, %128 : vector<16x128xbf16>
    %c0_64 = arith.constant 0 : index
    %c0_65 = arith.constant 0 : index
    %130 = vector.load %arg4[%c0_64, %c0_65] : memref<128x128xbf16, #tpu.memory_space<vmem>>, vector<128x128xbf16>
    %cst_66 = arith.constant dense<0.000000e+00> : vector<16x128xf32>
    %131 = tpu.matmul %129, %130, %cst_66 {dimension_numbers = #tpu.dot_dimension_numbers<[1], [0], [0], [1], [0, 0, 1, 1], [], []>} : vector<16x128xbf16>, vector<128x128xbf16>, vector<16x128xf32> -> vector<16x128xf32>
    %c0_67 = arith.constant 0 : index
    %c384 = arith.constant 384 : index
    %132 = vector.load %arg7[%c0_67, %c384] : memref<1x576xf32, #tpu.memory_space<vmem>>, vector<1x128xf32>
    %133 = vector.broadcast %132 : vector<1x128xf32> to vector<16x128xf32>
    %134 = arith.addf %131, %133 : vector<16x128xf32>
    %135 = arith.truncf %134 : vector<16x128xf32> to vector<16x128xbf16>
    %cst_68 = arith.constant 5.000000e-01 : bf16
    %136 = vector.broadcast %cst_68 : bf16 to vector<16x128xbf16>
    %137 = arith.mulf %136, %135 : vector<16x128xbf16>
    %cst_69 = arith.constant 4.467770e-02 : bf16
    %138 = vector.broadcast %cst_69 : bf16 to vector<16x128xbf16>
    %139 = arith.mulf %138, %135 : vector<16x128xbf16>
    %140 = arith.mulf %139, %135 : vector<16x128xbf16>
    %141 = arith.mulf %140, %135 : vector<16x128xbf16>
    %142 = arith.addf %135, %141 : vector<16x128xbf16>
    %cst_70 = arith.constant 7.968750e-01 : bf16
    %143 = vector.broadcast %cst_70 : bf16 to vector<16x128xbf16>
    %144 = arith.mulf %143, %142 : vector<16x128xbf16>
    %145 = math.tanh %144 : vector<16x128xbf16>
    %cst_71 = arith.constant 1.000000e+00 : bf16
    %146 = vector.broadcast %cst_71 : bf16 to vector<16x128xbf16>
    %147 = arith.addf %146, %145 : vector<16x128xbf16>
    %148 = arith.mulf %137, %147 : vector<16x128xbf16>
    %c0_72 = arith.constant 0 : index
    %c0_73 = arith.constant 0 : index
    %149 = vector.load %arg5[%c0_72, %c0_73] : memref<128x64xbf16, #tpu.memory_space<vmem>>, vector<128x64xbf16>
    %cst_74 = arith.constant dense<0.000000e+00> : vector<16x64xf32>
    %150 = tpu.matmul %148, %149, %cst_74 {dimension_numbers = #tpu.dot_dimension_numbers<[1], [0], [0], [1], [0, 0, 1, 1], [], []>} : vector<16x128xbf16>, vector<128x64xbf16>, vector<16x64xf32> -> vector<16x64xf32>
    %c0_75 = arith.constant 0 : index
    %c512 = arith.constant 512 : index
    %151 = vector.load %arg7[%c0_75, %c512] : memref<1x576xf32, #tpu.memory_space<vmem>>, vector<1x64xf32>
    %152 = vector.broadcast %151 : vector<1x64xf32> to vector<16x64xf32>
    %153 = arith.addf %150, %152 : vector<16x64xf32>
    %cst_76 = arith.constant 5.000000e-01 : f32
    %154 = vector.broadcast %cst_76 : f32 to vector<16x64xf32>
    %155 = arith.mulf %154, %153 : vector<16x64xf32>
    %cst_77 = arith.constant 4.471500e-02 : f32
    %156 = vector.broadcast %cst_77 : f32 to vector<16x64xf32>
    %157 = arith.mulf %156, %153 : vector<16x64xf32>
    %158 = arith.mulf %157, %153 : vector<16x64xf32>
    %159 = arith.mulf %158, %153 : vector<16x64xf32>
    %160 = arith.addf %153, %159 : vector<16x64xf32>
    %cst_78 = arith.constant 0.797884583 : f32
    %161 = vector.broadcast %cst_78 : f32 to vector<16x64xf32>
    %162 = arith.mulf %161, %160 : vector<16x64xf32>
    %163 = math.tanh %162 : vector<16x64xf32>
    %cst_79 = arith.constant 1.000000e+00 : f32
    %164 = vector.broadcast %cst_79 : f32 to vector<16x64xf32>
    %165 = arith.addf %164, %163 : vector<16x64xf32>
    %166 = arith.mulf %155, %165 : vector<16x64xf32>
    %c0_80 = arith.constant 0 : index
    %c0_81 = arith.constant 0 : index
    %167 = vector.load %arg6[%c0_80, %c0_81] : memref<1x64xf32, #tpu.memory_space<vmem>>, vector<1x64xf32>
    %168 = tpu.transpose %166, [1, 0] : vector<16x64xf32> -> vector<64x16xf32>
    %cst_82 = arith.constant dense<0.000000e+00> : vector<1x16xf32>
    %169 = tpu.matmul %167, %168, %cst_82 {dimension_numbers = #tpu.dot_dimension_numbers<[1], [0], [0], [1], [0, 0, 1, 1], [], []>} : vector<1x64xf32>, vector<64x16xf32>, vector<1x16xf32> -> vector<1x16xf32>
    %c0_83 = arith.constant 0 : index
    %c0_84 = arith.constant 0 : index
    %170 = vector.load %arg8[%c0_83, %c0_84] : memref<1x16xf32, #tpu.memory_space<vmem>>, vector<1x16xf32>
    tpu.vector_store %arg8[%c0_83, %c0_84], %169 {strides = array<i32>} : memref<1x16xf32, #tpu.memory_space<vmem>>, vector<1x16xf32>,
    return
  }
  func.func @transform_0(%arg0: i32) -> (i32, i32) {
    %c0_i32 = arith.constant 0 : i32
    %c0_i32_0 = arith.constant 0 : i32
    return %arg0, %c0_i32 : i32, i32
  }
  func.func @transform_1(%arg0: i32) -> (i32, i32, i32) {
    %c0_i32 = arith.constant 0 : i32
    %c0_i32_0 = arith.constant 0 : i32
    %c0_i32_1 = arith.constant 0 : i32
    %c0_i32_2 = arith.constant 0 : i32
    return %c0_i32, %c0_i32_0, %c0_i32_1 : i32, i32, i32
  }
  func.func @transform_2(%arg0: i32) -> (i32, i32, i32) {
    %c0_i32 = arith.constant 0 : i32
    %c0_i32_0 = arith.constant 0 : i32
    %c0_i32_1 = arith.constant 0 : i32
    %c0_i32_2 = arith.constant 0 : i32
    return %c0_i32, %c0_i32_0, %c0_i32_1 : i32, i32, i32
  }
  func.func @transform_3(%arg0: i32) -> (i32, i32) {
    %c0_i32 = arith.constant 0 : i32
    %c0_i32_0 = arith.constant 0 : i32
    %c0_i32_1 = arith.constant 0 : i32
    return %c0_i32, %c0_i32_0 : i32, i32
  }
  func.func @transform_4(%arg0: i32) -> (i32, i32) {
    %c0_i32 = arith.constant 0 : i32
    %c0_i32_0 = arith.constant 0 : i32
    %c0_i32_1 = arith.constant 0 : i32
    return %c0_i32, %c0_i32_0 : i32, i32
  }
  func.func @transform_5(%arg0: i32) -> (i32, i32) {
    %c0_i32 = arith.constant 0 : i32
    %c0_i32_0 = arith.constant 0 : i32
    %c0_i32_1 = arith.constant 0 : i32
    return %c0_i32, %c0_i32_0 : i32, i32
  }
  func.func @transform_6(%arg0: i32) -> (i32, i32) {
    %c0_i32 = arith.constant 0 : i32
    %c0_i32_0 = arith.constant 0 : i32
    %c0_i32_1 = arith.constant 0 : i32
    return %c0_i32, %c0_i32_0 : i32, i32
  }
  func.func @transform_7(%arg0: i32) -> (i32, i32) {
    %c0_i32 = arith.constant 0 : i32
    %c0_i32_0 = arith.constant 0 : i32
    return %arg0, %c0_i32 : i32, i32
  }
}

</mosaic_0001>

<llo_original>
// kernel: tile.13
$region0: #{tile.13}
  #allocation0 [shape = 's32[1]{0}', space=sflag, size = 0x4, scoped, tag = 'scoped memory for tile.13']
  %s0 = inlined_call_operand.vmem [shape: f32[16], index: 0, kind: input, shape index: {}]
  %s1 = inlined_call_operand.vmem [shape: f32[9,16], index: 1, kind: output, shape index: {}]
  // Predicated region
  $region2: #{tile.13} parent=0 // pred_check
    _
  $region3: #{tile.13} parent=0 // pred_check_branch
    %3 = sbr.rel (0) target = $region5
  $region4: #{tile.13} parent=0 // pred_region
    _
  $region5: #{tile.13} parent=0 // pred_fallthru
    _
  %v4 = vld [vmem:[%s0] ss:$0 sm:$0xff]
  %5 = vst [vmem:[%s1] sm:$0xff] %v4
  %s6 = scalar_lea.vmem %s1, 8
  %7 = vst [vmem:[%s6] sm:$0xff] %v4

// kernel: tile.14
$region0: #{tile.14}
  %s0 = inlined_call_operand.vmem [shape: f32[9,16], index: 0, kind: input, shape index: {}]
  %s1 = inlined_call_operand.vmem [shape: f32[144], index: 1, kind: output, shape index: {}]
  $region1: #{tile.14} parent=0
    #allocation0 [shape = 'u8[4096]{0}', space=vmem, size = 0x1000, scoped, tag = 'scoped mem for output reshape']
    %s2 = smov 3
    %v3 = vld [vmem:[%s0] ss:$8 sm:%s2]
    %vm4 = vcmask 130048
    %5 = vst.msk [vmem:[#allocation0] sm:$0x3] %vm4, %v3
    %s6 = scalar_lea.vmem %s0, 7
    %v7 = vld [vmem:[%s6] sm:$0x1]
    %8 = vrot.lane.b32.xlu0 %v7, 112
    %v9 = vpop.permute.xlu0 %8
    %vm10 = vcmask 1048448
    %11 = vst.msk [vmem:[#allocation0] sm:$0x1] %vm10, %v9
    %s12 = scalar_lea.vmem %s0, 6
    %v13 = vld [vmem:[%s12] sm:$0x1]
    %14 = vrot.lane.b32.xlu0 %v13, 96
    %v15 = vpop.permute.xlu0 %14
    %vm16 = vcmask 917248
    %17 = vst.msk [vmem:[#allocation0] sm:$0x1] %vm16, %v15
    %s18 = scalar_lea.vmem %s0, 5
    %v19 = vld [vmem:[%s18] sm:$0x1]
    %20 = vrot.lane.b32.xlu0 %v19, 80
    %v21 = vpop.permute.xlu0 %20
    %vm22 = vcmask 786048
    %23 = vst.msk [vmem:[#allocation0] sm:$0x1] %vm22, %v21
    %s24 = scalar_lea.vmem %s0, 4
    %v25 = vld [vmem:[%s24] sm:$0x1]
    %26 = vrot.lane.b32.xlu0 %v25, 64
    %v27 = vpop.permute.xlu0 %26
    %vm28 = vcmask 654848
    %29 = vst.msk [vmem:[#allocation0] sm:$0x1] %vm28, %v27
    %s30 = scalar_lea.vmem %s0, 3
    %v31 = vld [vmem:[%s30] sm:$0x1]
    %32 = vrot.lane.b32.xlu0 %v31, 48
    %v33 = vpop.permute.xlu0 %32
    %vm34 = vcmask 523648
    %35 = vst.msk [vmem:[#allocation0] sm:$0x1] %vm34, %v33
    %s36 = scalar_lea.vmem %s0, 2
    %v37 = vld [vmem:[%s36] sm:$0x1]
    %38 = vrot.lane.b32.xlu0 %v37, 32
    %v39 = vpop.permute.xlu0 %38
    %vm40 = vcmask 392448
    %41 = vst.msk [vmem:[#allocation0] sm:$0x1] %vm40, %v39
    %s42 = scalar_lea.vmem %s0, 1
    %v43 = vld [vmem:[%s42] sm:$0x1]
    %44 = vrot.lane.b32.xlu0 %v43, 16
    %v45 = vpop.permute.xlu0 %44
    %vm46 = vcmask 261248
    %47 = vst.msk [vmem:[#allocation0] sm:$0x1] %vm46, %v45
    %s49 = sshll.u32 1, 2
    %s50 = ssub.s32 %s49, 1
    %v52 = vld [vmem:[#allocation0] sm:%s50]
    %s53 = sshll.u32 1, 2
    %s54 = ssub.s32 %s53, 1
    %55 = vst [vmem:[%s1] sm:%s54] %v52

// kernel: tile.18
$region0: #{tile.18}
  #allocation0 [shape = 's32[1]{0}', space=sflag, size = 0x4, scoped, tag = 'scoped memory for tile.18']
  %s0 = inlined_call_operand.vmem [shape: f32[32], index: 0, kind: input, shape index: {}]
  %s1 = inlined_call_operand.vmem [shape: f32[4,32], index: 1, kind: output, shape index: {}]
  // Predicated region
  $region2: #{tile.18} parent=0 // pred_check
    _
  $region3: #{tile.18} parent=0 // pred_check_branch
    %3 = sbr.rel (0) target = $region5
  $region4: #{tile.18} parent=0 // pred_region
    _
  $region5: #{tile.18} parent=0 // pred_fallthru
    _
  %v4 = vld [vmem:[%s0] ss:$0 sm:$0xff]
  %5 = vst [vmem:[%s1] sm:$0xf] %v4

// kernel: tile.19
$region0: #{tile.19}
  %s0 = inlined_call_operand.vmem [shape: f32[4,32], index: 0, kind: input, shape index: {}]
  %s1 = inlined_call_operand.vmem [shape: f32[128], index: 1, kind: output, shape index: {}]
  $region1: #{tile.19} parent=0
    #allocation0 [shape = 'u8[4096]{0}', space=vmem, size = 0x1000, scoped, tag = 'scoped mem for output reshape']
    #allocation1 [shape = 'u8[4096]{0}', space=vmem, size = 0x1000, scoped, tag = 'scoped mem for input reshape']
    %s3 = sshll.u32 1, 4
    %s4 = ssub.s32 %s3, 1
    %v5 = vld [vmem:[%s0] sm:%s4]
    %6 = vst [vmem:[#allocation1] sm:%s4] %v5
    %v7 = vld [vmem:[#allocation1] sm:$0x1]
    %vm8 = vcmask 261120
    %9 = vst.msk [vmem:[#allocation0] sm:$0x1] %vm8, %v7
    %s10 = scalar_lea.vmem [#allocation1], 3
    %v11 = vld [vmem:[%s10] sm:$0x1]
    %12 = vrot.lane.b32.xlu0 %v11, 96
    %v13 = vpop.permute.xlu0 %12
    %vm14 = vcmask 1048320
    %15 = vst.msk [vmem:[#allocation0] sm:$0x1] %vm14, %v13
    %s16 = scalar_lea.vmem [#allocation1], 2
    %v17 = vld [vmem:[%s16] sm:$0x1]
    %18 = vrot.lane.b32.xlu0 %v17, 64
    %v19 = vpop.permute.xlu0 %18
    %vm20 = vcmask 785920
    %21 = vst.msk [vmem:[#allocation0] sm:$0x1] %vm20, %v19
    %s22 = scalar_lea.vmem [#allocation1], 1
    %v23 = vld [vmem:[%s22] sm:$0x1]
    %24 = vrot.lane.b32.xlu0 %v23, 32
    %v25 = vpop.permute.xlu0 %24
    %vm26 = vcmask 523520
    %27 = vst.msk [vmem:[#allocation0] sm:$0x1] %vm26, %v25
    %s29 = sshll.u32 1, 1
    %s30 = ssub.s32 %s29, 1
    %v32 = vld [vmem:[#allocation0] sm:%s30]
    %s33 = sshll.u32 1, 1
    %s34 = ssub.s32 %s33, 1
    %35 = vst [vmem:[%s1] sm:%s34] %v32

// kernel: feature_v3_forward.1
$region0: #{feature_v3_forward.1}
  #allocation0 [shape = 'u32[]', space=smem, size = 0x4, offset = 0x4, fixed_abs, tag = 'smem constant byte address 0x4 - core index']
  #allocation1 [shape = 'u32[144,128]{1,0:T(1,128)}', space=vmem, size = 0x12000, scoped, tag = 'internal scratch']
  %s0 = inlined_call_operand.vmem [shape: bf16[96,192], index: 0, kind: input, shape index: {}]
  %s1 = inlined_call_operand.vmem [shape: bf16[4,192,144], index: 1, kind: input, shape index: {}]
  %s2 = inlined_call_operand.vmem [shape: bf16[6,144,128], index: 2, kind: input, shape index: {}]
  %s3 = inlined_call_operand.vmem [shape: bf16[128,128], index: 3, kind: input, shape index: {}]
  %s4 = inlined_call_operand.vmem [shape: bf16[128,64], index: 4, kind: input, shape index: {}]
  %s5 = inlined_call_operand.vmem [shape: f32[1,64], index: 5, kind: input, shape index: {}]
  %s6 = inlined_call_operand.vmem [shape: f32[1,576], index: 6, kind: input, shape index: {}]
  %s7 = inlined_call_operand.vmem [shape: f32[1,16], index: 7, kind: output, shape index: {}]
  %s8 = sld [smem:[#allocation0]]
  $region38: #{feature_v3_forward.1} parent=0
    _
  %s10 = ssub.s32 1, %s8
  %s11 = scalar_select 0, %s10, %s8
  // Predicated region
  $region2: #{feature_v3_forward.1} parent=0 // pred_check
    _
  $region3: #{feature_v3_forward.1} parent=0 // pred_check_branch
    %13 = sbr.rel (0) target = $region5
  $region4: #{feature_v3_forward.1} parent=0 // pred_region
    _
  $region5: #{feature_v3_forward.1} parent=0 // pred_fallthru
    _
  // Predicated region
  $region6: #{feature_v3_forward.1} parent=0 // pred_check
    _
  $region7: #{feature_v3_forward.1} parent=0 // pred_check_branch
    %15 = sbr.rel (0) target = $region9
  $region8: #{feature_v3_forward.1} parent=0 // pred_region
    _
  $region9: #{feature_v3_forward.1} parent=0 // pred_fallthru
    _
  // Predicated region
  $region10: #{feature_v3_forward.1} parent=0 // pred_check
    _
  $region11: #{feature_v3_forward.1} parent=0 // pred_check_branch
    %17 = sbr.rel (0) target = $region13
  $region12: #{feature_v3_forward.1} parent=0 // pred_region
    _
  $region13: #{feature_v3_forward.1} parent=0 // pred_fallthru
    _
  // Predicated region
  $region14: #{feature_v3_forward.1} parent=0 // pred_check
    _
  $region15: #{feature_v3_forward.1} parent=0 // pred_check_branch
    %19 = sbr.rel (0) target = $region17
  $region16: #{feature_v3_forward.1} parent=0 // pred_region
    _
  $region17: #{feature_v3_forward.1} parent=0 // pred_fallthru
    _
  // Predicated region
  $region18: #{feature_v3_forward.1} parent=0 // pred_check
    _
  $region19: #{feature_v3_forward.1} parent=0 // pred_check_branch
    %21 = sbr.rel (0) target = $region21
  $region20: #{feature_v3_forward.1} parent=0 // pred_region
    _
  $region21: #{feature_v3_forward.1} parent=0 // pred_fallthru
    _
  // Predicated region
  $region22: #{feature_v3_forward.1} parent=0 // pred_check
    _
  $region23: #{feature_v3_forward.1} parent=0 // pred_check_branch
    %23 = sbr.rel (0) target = $region25
  $region24: #{feature_v3_forward.1} parent=0 // pred_region
    _
  $region25: #{feature_v3_forward.1} parent=0 // pred_fallthru
    _
  // Predicated region
  $region26: #{feature_v3_forward.1} parent=0 // pred_check
    _
  $region27: #{feature_v3_forward.1} parent=0 // pred_check_branch
    %25 = sbr.rel (0) target = $region29
  $region28: #{feature_v3_forward.1} parent=0 // pred_region
    _
  $region29: #{feature_v3_forward.1} parent=0 // pred_fallthru
    _
  %v31 = vld [vmem:[%s6] sm:$0x3]
  %v32 = vld [vmem:[%s0] sm:$0xff]
  %v33 = vld [vmem:[%s0 + $0x8] sm:$0xff]
  %v34 = vld [vmem:[%s0 + $0x10] sm:$0xff]
  %v35 = vld [vmem:[%s0 + $0x18] sm:$0xff]
  %v36 = vld [vmem:[%s0 + $0x20] sm:$0xff]
  %v37 = vld [vmem:[%s0 + $0x28] sm:$0xff]
  %v38 = vld [vmem:[%s0 + $0x30] sm:$0xff]
  %v39 = vld [vmem:[%s0 + $0x38] sm:$0xff]
  %v40 = vld [vmem:[%s0 + $0x40] sm:$0xff]
  %v41 = vld [vmem:[%s0 + $0x48] sm:$0xff]
  %v42 = vld [vmem:[%s0 + $0x50] sm:$0xff]
  %v43 = vld [vmem:[%s0 + $0x58] sm:$0xff]
  %v44 = vld [vmem:[%s1] sm:$0xff]
  %v45 = vld [vmem:[%s1 + $0x8] sm:$0xff]
  %v46 = vld [vmem:[%s1 + $0x10] sm:$0xff]
  %v47 = vld [vmem:[%s1 + $0x18] sm:$0xff]
  %v48 = vld [vmem:[%s1 + $0x20] sm:$0xff]
  %v49 = vld [vmem:[%s1 + $0x28] sm:$0xff]
  %v50 = vld [vmem:[%s1 + $0x30] sm:$0xff]
  %v51 = vld [vmem:[%s1 + $0x38] sm:$0xff]
  %v52 = vld [vmem:[%s1 + $0x40] sm:$0xff]
  %v53 = vld [vmem:[%s1 + $0x48] sm:$0xff]
  %v54 = vld [vmem:[%s1 + $0x50] sm:$0xff]
  %v55 = vld [vmem:[%s1 + $0x58] sm:$0xff]
  %v56 = vld [vmem:[%s1 + $0x60] sm:$0xff]
  %v57 = vld [vmem:[%s1 + $0x68] sm:$0xff]
  %v58 = vld [vmem:[%s1 + $0x70] sm:$0xff]
  %v59 = vld [vmem:[%s1 + $0x78] sm:$0xff]
  %v60 = vld [vmem:[%s1 + $0x80] sm:$0xff]
  %v61 = vld [vmem:[%s1 + $0x88] sm:$0xff]
  %v62 = vld [vmem:[%s1 + $0x90] sm:$0xff]
  %v63 = vld [vmem:[%s1 + $0x98] sm:$0xff]
  %v64 = vld [vmem:[%s1 + $0xa0] sm:$0xff]
  %v65 = vld [vmem:[%s1 + $0xa8] sm:$0xff]
  %v66 = vld [vmem:[%s1 + $0xb0] sm:$0xff]
  %v67 = vld [vmem:[%s1 + $0xb8] sm:$0xff]
  %v69 = vlaneseq
  %v70 = vshrl.u32 %v69, 7
  %v71 = vsub.s32 0, %v70
  %v72 = vrot.slane %v31, %v71
  %v73 = vlaneseq
  %v74 = vshrl.u32 %v73, 7
  %v75 = vsub.s32 1, %v74
  %v76 = vrot.slane %v31, %v75
  %v91 = vunpack.c.l.b16 %v32
  %v92 = vunpack.c.h.b16 %v32
  %v93 = vunpack.c.l.b16 %v33
  %v94 = vunpack.c.h.b16 %v33
  %v95 = vunpack.c.l.b16 %v34
  %v96 = vunpack.c.h.b16 %v34
  %v97 = vunpack.c.l.b16 %v35
  %v98 = vunpack.c.h.b16 %v35
  %v99 = vunpack.c.l.b16 %v36
  %v100 = vunpack.c.h.b16 %v36
  %v101 = vunpack.c.l.b16 %v37
  %v102 = vunpack.c.h.b16 %v37
  %v103 = vunpack.c.l.b16 %v38
  %v104 = vunpack.c.h.b16 %v38
  %v105 = vunpack.c.l.b16 %v39
  %v106 = vunpack.c.h.b16 %v39
  %v107 = vunpack.c.l.b16 %v40
  %v108 = vunpack.c.h.b16 %v40
  %v109 = vunpack.c.l.b16 %v41
  %v110 = vunpack.c.h.b16 %v41
  %v111 = vunpack.c.l.b16 %v42
  %v112 = vunpack.c.h.b16 %v42
  %v113 = vunpack.c.l.b16 %v43
  %v114 = vunpack.c.h.b16 %v43
  %v115 = vpack.c.b16 %v93, %v91
  %v116 = vpack.c.b16 %v94, %v92
  %v117 = vpack.c.b16 %v97, %v95
  %v118 = vpack.c.b16 %v98, %v96
  %v119 = vpack.c.b16 %v101, %v99
  %v120 = vpack.c.b16 %v102, %v100
  %v121 = vpack.c.b16 %v105, %v103
  %v122 = vpack.c.b16 %v106, %v104
  %v123 = vpack.c.b16 %v109, %v107
  %v124 = vpack.c.b16 %v110, %v108
  %v125 = vpack.c.b16 %v113, %v111
  %v126 = vpack.c.b16 %v114, %v112
  %v157 = vunpack.c.l.b16 %v44
  %v158 = vunpack.c.h.b16 %v44
  %v159 = vunpack.c.l.b16 %v45
  %v160 = vunpack.c.h.b16 %v45
  %v161 = vunpack.c.l.b16 %v46
  %v162 = vunpack.c.h.b16 %v46
  %v163 = vunpack.c.l.b16 %v47
  %v164 = vunpack.c.h.b16 %v47
  %v165 = vunpack.c.l.b16 %v48
  %v166 = vunpack.c.h.b16 %v48
  %v167 = vunpack.c.l.b16 %v49
  %v168 = vunpack.c.h.b16 %v49
  %v169 = vunpack.c.l.b16 %v50
  %v170 = vunpack.c.h.b16 %v50
  %v171 = vunpack.c.l.b16 %v51
  %v172 = vunpack.c.h.b16 %v51
  %v173 = vunpack.c.l.b16 %v52
  %v174 = vunpack.c.h.b16 %v52
  %v175 = vunpack.c.l.b16 %v53
  %v176 = vunpack.c.h.b16 %v53
  %v177 = vunpack.c.l.b16 %v54
  %v178 = vunpack.c.h.b16 %v54
  %v179 = vunpack.c.l.b16 %v55
  %v180 = vunpack.c.h.b16 %v55
  %v181 = vunpack.c.l.b16 %v56
  %v182 = vunpack.c.h.b16 %v56
  %v183 = vunpack.c.l.b16 %v57
  %v184 = vunpack.c.h.b16 %v57
  %v185 = vunpack.c.l.b16 %v58
  %v186 = vunpack.c.h.b16 %v58
  %v187 = vunpack.c.l.b16 %v59
  %v188 = vunpack.c.h.b16 %v59
  %v189 = vunpack.c.l.b16 %v60
  %v190 = vunpack.c.h.b16 %v60
  %v191 = vunpack.c.l.b16 %v61
  %v192 = vunpack.c.h.b16 %v61
  %v193 = vunpack.c.l.b16 %v62
  %v194 = vunpack.c.h.b16 %v62
  %v195 = vunpack.c.l.b16 %v63
  %v196 = vunpack.c.h.b16 %v63
  %v197 = vunpack.c.l.b16 %v64
  %v198 = vunpack.c.h.b16 %v64
  %v199 = vunpack.c.l.b16 %v65
  %v200 = vunpack.c.h.b16 %v65
  %v201 = vunpack.c.l.b16 %v66
  %v202 = vunpack.c.h.b16 %v66
  %v203 = vunpack.c.l.b16 %v67
  %v204 = vunpack.c.h.b16 %v67
  %v205 = vpack.c.b16 %v159, %v157
  %v206 = vpack.c.b16 %v160, %v158
  %v207 = vpack.c.b16 %v163, %v161
  %v208 = vpack.c.b16 %v164, %v162
  %v209 = vpack.c.b16 %v167, %v165
  %v210 = vpack.c.b16 %v168, %v166
  %v211 = vpack.c.b16 %v171, %v169
  %v212 = vpack.c.b16 %v172, %v170
  %v213 = vpack.c.b16 %v175, %v173
  %v214 = vpack.c.b16 %v176, %v174
  %v215 = vpack.c.b16 %v179, %v177
  %v216 = vpack.c.b16 %v180, %v178
  %v217 = vpack.c.b16 %v183, %v181
  %v218 = vpack.c.b16 %v184, %v182
  %v219 = vpack.c.b16 %v187, %v185
  %v220 = vpack.c.b16 %v188, %v186
  %v221 = vpack.c.b16 %v191, %v189
  %v222 = vpack.c.b16 %v192, %v190
  %v223 = vpack.c.b16 %v195, %v193
  %v224 = vpack.c.b16 %v196, %v194
  %v225 = vpack.c.b16 %v199, %v197
  %v226 = vpack.c.b16 %v200, %v198
  %v227 = vpack.c.b16 %v203, %v201
  %v228 = vpack.c.b16 %v204, %v202
  %vm253 = vcmask 523264
  %v255 = vsel %vm253, %v116, 0
  %v258 = vsel %vm253, %v118, 0
  %v261 = vsel %vm253, %v120, 0
  %v264 = vsel %vm253, %v122, 0
  %v267 = vsel %vm253, %v124, 0
  %v270 = vsel %vm253, %v126, 0
  %272 = vmatprep.subr.bf16.mxu0 %v220
  %273 = vmatpush1.bf16.msra.mxu0 %v219
  %274 = vmatprep.subr.bf16.mxu0 %v218
  %275 = vmatpush1.bf16.msra.mxu0 %v217
  %276 = vmatprep.subr.bf16.mxu0 %v216
  %277 = vmatpush1.bf16.msra.mxu0 %v215
  %278 = vmatprep.subr.bf16.mxu0 %v214
  %279 = vmatpush1.bf16.msra.mxu0 %v213
  %280 = vmatprep.subr.bf16.mxu0 %v212
  %281 = vmatpush1.bf16.msra.mxu0 %v211
  %282 = vmatprep.subr.bf16.mxu0 %v210
  %283 = vmatpush1.bf16.msra.mxu0 %v209
  %284 = vmatprep.subr.bf16.mxu0 %v208
  %285 = vmatpush1.bf16.msra.mxu0 %v207
  %286 = vmatprep.subr.bf16.mxu0 %v206
  %287 = vmatpush1.bf16.msra.mxu0 %v205
  %288 = vmatprep.subr.bf16.mxu0 0
  %289 = vmatpush2.bf16.msra.mxu0 0
  %290 = vmatprep.subr.bf16.mxu0 0
  %291 = vmatpush2.bf16.msra.mxu0 0
  %292 = vmatprep.subr.bf16.mxu0 0
  %293 = vmatpush2.bf16.msra.mxu0 0
  %294 = vmatprep.subr.bf16.mxu0 0
  %295 = vmatpush2.bf16.msra.mxu0 0
  %296 = vmatprep.subr.bf16.mxu0 %v228
  %297 = vmatpush2.bf16.msra.mxu0 %v227
  %298 = vmatprep.subr.bf16.mxu0 %v226
  %299 = vmatpush2.bf16.msra.mxu0 %v225
  %300 = vmatprep.subr.bf16.mxu0 %v224
  %301 = vmatpush2.bf16.msra.mxu0 %v223
  %302 = vmatprep.subr.bf16.mxu0 %v222
  %303 = vmatpush2.bf16.msra.mxu0 %v221
  %304 = vmatprep.mubr.bf16.mxu0 %v255
  %305 = vmatmul.mubr.bf16.gmra.mxu0 %v115
  %v306 = vpop.f32.mrf.mxu0
  %v307 = vadd.f32 %v72, %v306
  %v308 = vpop.f32.mrf.mxu0
  %v309 = vadd.f32 %v76, %v308
  %v310 = vpop.f32.mrf.mxu0
  %v311 = vadd.f32 %v72, %v310
  %v312 = vpop.f32.mrf.mxu0
  %v313 = vadd.f32 %v76, %v312
  %314 = vmatprep.mubr.bf16.mxu0 %v258
  %315 = vmatmul.mubr.bf16.gmra.mxu0 %v117
  %v316 = vpop.f32.mrf.mxu0
  %v317 = vadd.f32 %v72, %v316
  %v318 = vpop.f32.mrf.mxu0
  %v319 = vadd.f32 %v76, %v318
  %v320 = vpop.f32.mrf.mxu0
  %v321 = vadd.f32 %v72, %v320
  %v322 = vpop.f32.mrf.mxu0
  %v323 = vadd.f32 %v76, %v322
  %324 = vmatprep.mubr.bf16.mxu0 %v261
  %325 = vmatmul.mubr.bf16.gmra.mxu0 %v119
  %v326 = vpop.f32.mrf.mxu0
  %v327 = vadd.f32 %v72, %v326
  %v328 = vpop.f32.mrf.mxu0
  %v329 = vadd.f32 %v76, %v328
  %v330 = vpop.f32.mrf.mxu0
  %v331 = vadd.f32 %v72, %v330
  %v332 = vpop.f32.mrf.mxu0
  %v333 = vadd.f32 %v76, %v332
  %334 = vmatprep.mubr.bf16.mxu0 %v264
  %335 = vmatmul.mubr.bf16.gmra.mxu0 %v121
  %v336 = vpop.f32.mrf.mxu0
  %v337 = vadd.f32 %v72, %v336
  %v338 = vpop.f32.mrf.mxu0
  %v339 = vadd.f32 %v76, %v338
  %v340 = vpop.f32.mrf.mxu0
  %v341 = vadd.f32 %v72, %v340
  %v342 = vpop.f32.mrf.mxu0
  %v343 = vadd.f32 %v76, %v342
  %344 = vmatprep.mubr.bf16.mxu0 %v267
  %345 = vmatmul.mubr.bf16.gmra.mxu0 %v123
  %v346 = vpop.f32.mrf.mxu0
  %v347 = vadd.f32 %v72, %v346
  %v348 = vpop.f32.mrf.mxu0
  %v349 = vadd.f32 %v76, %v348
  %v350 = vpop.f32.mrf.mxu0
  %v351 = vadd.f32 %v72, %v350
  %v352 = vpop.f32.mrf.mxu0
  %v353 = vadd.f32 %v76, %v352
  %354 = vmatprep.mubr.bf16.mxu0 %v270
  %355 = vmatmul.mubr.bf16.gmra.mxu0 %v125
  %v356 = vpop.f32.mrf.mxu0
  %v357 = vadd.f32 %v72, %v356
  %v358 = vpop.f32.mrf.mxu0
  %v359 = vadd.f32 %v76, %v358
  %v360 = vpop.f32.mrf.mxu0
  %v361 = vadd.f32 %v72, %v360
  %v362 = vpop.f32.mrf.mxu0
  %v363 = vadd.f32 %v76, %v362
  %364 = vdwg.mxu0
  %v365 = vpack.c.bf16 %v311, %v307
  %v366 = vpack.c.bf16 %v313, %v309
  %v367 = vpack.c.bf16 %v321, %v317
  %v368 = vpack.c.bf16 %v323, %v319
  %v369 = vpack.c.bf16 %v331, %v327
  %v370 = vpack.c.bf16 %v333, %v329
  %v371 = vpack.c.bf16 %v341, %v337
  %v372 = vpack.c.bf16 %v343, %v339
  %v373 = vpack.c.bf16 %v351, %v347
  %v374 = vpack.c.bf16 %v353, %v349
  %v375 = vpack.c.bf16 %v361, %v357
  %v376 = vpack.c.bf16 %v363, %v359
  %v377 = vmul.bf16 %v365, 1056980736
  %v378 = vmul.bf16 %v366, 1056980736
  %v379 = vmul.bf16 %v367, 1056980736
  %v380 = vmul.bf16 %v368, 1056980736
  %v381 = vmul.bf16 %v369, 1056980736
  %v382 = vmul.bf16 %v370, 1056980736
  %v383 = vmul.bf16 %v371, 1056980736
  %v384 = vmul.bf16 %v372, 1056980736
  %v385 = vmul.bf16 %v373, 1056980736
  %v386 = vmul.bf16 %v374, 1056980736
  %v387 = vmul.bf16 %v375, 1056980736
  %v388 = vmul.bf16 %v376, 1056980736
  %v389 = vmul.bf16 %v365, 1027030327
  %v390 = vmul.bf16 %v366, 1027030327
  %v391 = vmul.bf16 %v367, 1027030327
  %v392 = vmul.bf16 %v368, 1027030327
  %v393 = vmul.bf16 %v369, 1027030327
  %v394 = vmul.bf16 %v370, 1027030327
  %v395 = vmul.bf16 %v371, 1027030327
  %v396 = vmul.bf16 %v372, 1027030327
  %v397 = vmul.bf16 %v373, 1027030327
  %v398 = vmul.bf16 %v374, 1027030327
  %v399 = vmul.bf16 %v375, 1027030327
  %v400 = vmul.bf16 %v376, 1027030327
  %v401 = vmul.bf16 %v389, %v365
  %v402 = vmul.bf16 %v390, %v366
  %v403 = vmul.bf16 %v391, %v367
  %v404 = vmul.bf16 %v392, %v368
  %v405 = vmul.bf16 %v393, %v369
  %v406 = vmul.bf16 %v394, %v370
  %v407 = vmul.bf16 %v395, %v371
  %v408 = vmul.bf16 %v396, %v372
  %v409 = vmul.bf16 %v397, %v373
  %v410 = vmul.bf16 %v398, %v374
  %v411 = vmul.bf16 %v399, %v375
  %v412 = vmul.bf16 %v400, %v376
  %v413 = vmul.bf16 %v401, %v365
  %v414 = vmul.bf16 %v402, %v366
  %v415 = vmul.bf16 %v403, %v367
  %v416 = vmul.bf16 %v404, %v368
  %v417 = vmul.bf16 %v405, %v369
  %v418 = vmul.bf16 %v406, %v370
  %v419 = vmul.bf16 %v407, %v371
  %v420 = vmul.bf16 %v408, %v372
  %v421 = vmul.bf16 %v409, %v373
  %v422 = vmul.bf16 %v410, %v374
  %v423 = vmul.bf16 %v411, %v375
  %v424 = vmul.bf16 %v412, %v376
  %v425 = vadd.bf16 %v365, %v413
  %v426 = vadd.bf16 %v366, %v414
  %v427 = vadd.bf16 %v367, %v415
  %v428 = vadd.bf16 %v368, %v416
  %v429 = vadd.bf16 %v369, %v417
  %v430 = vadd.bf16 %v370, %v418
  %v431 = vadd.bf16 %v371, %v419
  %v432 = vadd.bf16 %v372, %v420
  %v433 = vadd.bf16 %v373, %v421
  %v434 = vadd.bf16 %v374, %v422
  %v435 = vadd.bf16 %v375, %v423
  %v436 = vadd.bf16 %v376, %v424
  %v437 = vmul.bf16 %v425, 1061961548
  %v438 = vmul.bf16 %v426, 1061961548
  %v439 = vmul.bf16 %v427, 1061961548
  %v440 = vmul.bf16 %v428, 1061961548
  %v441 = vmul.bf16 %v429, 1061961548
  %v442 = vmul.bf16 %v430, 1061961548
  %v443 = vmul.bf16 %v431, 1061961548
  %v444 = vmul.bf16 %v432, 1061961548
  %v445 = vmul.bf16 %v433, 1061961548
  %v446 = vmul.bf16 %v434, 1061961548
  %v447 = vmul.bf16 %v435, 1061961548
  %v448 = vmul.bf16 %v436, 1061961548
  %v449 = vtanh.bf16.pop %v437
  %v450 = vtanh.bf16.pop %v438
  %v451 = vtanh.bf16.pop %v439
  %v452 = vtanh.bf16.pop %v440
  %v453 = vtanh.bf16.pop %v441
  %v454 = vtanh.bf16.pop %v442
  %v455 = vtanh.bf16.pop %v443
  %v456 = vtanh.bf16.pop %v444
  %v457 = vtanh.bf16.pop %v445
  %v458 = vtanh.bf16.pop %v446
  %v459 = vtanh.bf16.pop %v447
  %v460 = vtanh.bf16.pop %v448
  %v461 = vadd.bf16 %v449, 1065369472
  %v462 = vadd.bf16 %v450, 1065369472
  %v463 = vadd.bf16 %v451, 1065369472
  %v464 = vadd.bf16 %v452, 1065369472
  %v465 = vadd.bf16 %v453, 1065369472
  %v466 = vadd.bf16 %v454, 1065369472
  %v467 = vadd.bf16 %v455, 1065369472
  %v468 = vadd.bf16 %v456, 1065369472
  %v469 = vadd.bf16 %v457, 1065369472
  %v470 = vadd.bf16 %v458, 1065369472
  %v471 = vadd.bf16 %v459, 1065369472
  %v472 = vadd.bf16 %v460, 1065369472
  %v473 = vmul.bf16 %v377, %v461
  %v474 = vmul.bf16 %v378, %v462
  %v475 = vmul.bf16 %v379, %v463
  %v476 = vmul.bf16 %v380, %v464
  %v477 = vmul.bf16 %v381, %v465
  %v478 = vmul.bf16 %v382, %v466
  %v479 = vmul.bf16 %v383, %v467
  %v480 = vmul.bf16 %v384, %v468
  %v481 = vmul.bf16 %v385, %v469
  %v482 = vmul.bf16 %v386, %v470
  %v483 = vmul.bf16 %v387, %v471
  %v484 = vmul.bf16 %v388, %v472
  %s485 = scalar_lea.vmem %s1, 192
  %v486 = vld [vmem:[%s485] sm:$0xff]
  %v487 = vld [vmem:[%s485 + $0x8] sm:$0xff]
  %v488 = vld [vmem:[%s485 + $0x10] sm:$0xff]
  %v489 = vld [vmem:[%s485 + $0x18] sm:$0xff]
  %v490 = vld [vmem:[%s485 + $0x20] sm:$0xff]
  %v491 = vld [vmem:[%s485 + $0x28] sm:$0xff]
  %v492 = vld [vmem:[%s485 + $0x30] sm:$0xff]
  %v493 = vld [vmem:[%s485 + $0x38] sm:$0xff]
  %v494 = vld [vmem:[%s485 + $0x40] sm:$0xff]
  %v495 = vld [vmem:[%s485 + $0x48] sm:$0xff]
  %v496 = vld [vmem:[%s485 + $0x50] sm:$0xff]
  %v497 = vld [vmem:[%s485 + $0x58] sm:$0xff]
  %v498 = vld [vmem:[%s485 + $0x60] sm:$0xff]
  %v499 = vld [vmem:[%s485 + $0x68] sm:$0xff]
  %v500 = vld [vmem:[%s485 + $0x70] sm:$0xff]
  %v501 = vld [vmem:[%s485 + $0x78] sm:$0xff]
  %v502 = vld [vmem:[%s485 + $0x80] sm:$0xff]
  %v503 = vld [vmem:[%s485 + $0x88] sm:$0xff]
  %v504 = vld [vmem:[%s485 + $0x90] sm:$0xff]
  %v505 = vld [vmem:[%s485 + $0x98] sm:$0xff]
  %v506 = vld [vmem:[%s485 + $0xa0] sm:$0xff]
  %v507 = vld [vmem:[%s485 + $0xa8] sm:$0xff]
  %v508 = vld [vmem:[%s485 + $0xb0] sm:$0xff]
  %v509 = vld [vmem:[%s485 + $0xb8] sm:$0xff]
  %v534 = vunpack.c.l.b16 %v486
  %v535 = vunpack.c.h.b16 %v486
  %v536 = vunpack.c.l.b16 %v487
  %v537 = vunpack.c.h.b16 %v487
  %v538 = vunpack.c.l.b16 %v488
  %v539 = vunpack.c.h.b16 %v488
  %v540 = vunpack.c.l.b16 %v489
  %v541 = vunpack.c.h.b16 %v489
  %v542 = vunpack.c.l.b16 %v490
  %v543 = vunpack.c.h.b16 %v490
  %v544 = vunpack.c.l.b16 %v491
  %v545 = vunpack.c.h.b16 %v491
  %v546 = vunpack.c.l.b16 %v492
  %v547 = vunpack.c.h.b16 %v492
  %v548 = vunpack.c.l.b16 %v493
  %v549 = vunpack.c.h.b16 %v493
  %v550 = vunpack.c.l.b16 %v494
  %v551 = vunpack.c.h.b16 %v494
  %v552 = vunpack.c.l.b16 %v495
  %v553 = vunpack.c.h.b16 %v495
  %v554 = vunpack.c.l.b16 %v496
  %v555 = vunpack.c.h.b16 %v496
  %v556 = vunpack.c.l.b16 %v497
  %v557 = vunpack.c.h.b16 %v497
  %v558 = vunpack.c.l.b16 %v498
  %v559 = vunpack.c.h.b16 %v498
  %v560 = vunpack.c.l.b16 %v499
  %v561 = vunpack.c.h.b16 %v499
  %v562 = vunpack.c.l.b16 %v500
  %v563 = vunpack.c.h.b16 %v500
  %v564 = vunpack.c.l.b16 %v501
  %v565 = vunpack.c.h.b16 %v501
  %v566 = vunpack.c.l.b16 %v502
  %v567 = vunpack.c.h.b16 %v502
  %v568 = vunpack.c.l.b16 %v503
  %v569 = vunpack.c.h.b16 %v503
  %v570 = vunpack.c.l.b16 %v504
  %v571 = vunpack.c.h.b16 %v504
  %v572 = vunpack.c.l.b16 %v505
  %v573 = vunpack.c.h.b16 %v505
  %v574 = vunpack.c.l.b16 %v506
  %v575 = vunpack.c.h.b16 %v506
  %v576 = vunpack.c.l.b16 %v507
  %v577 = vunpack.c.h.b16 %v507
  %v578 = vunpack.c.l.b16 %v508
  %v579 = vunpack.c.h.b16 %v508
  %v580 = vunpack.c.l.b16 %v509
  %v581 = vunpack.c.h.b16 %v509
  %v582 = vpack.c.b16 %v536, %v534
  %v583 = vpack.c.b16 %v537, %v535
  %v584 = vpack.c.b16 %v540, %v538
  %v585 = vpack.c.b16 %v541, %v539
  %v586 = vpack.c.b16 %v544, %v542
  %v587 = vpack.c.b16 %v545, %v543
  %v588 = vpack.c.b16 %v548, %v546
  %v589 = vpack.c.b16 %v549, %v547
  %v590 = vpack.c.b16 %v552, %v550
  %v591 = vpack.c.b16 %v553, %v551
  %v592 = vpack.c.b16 %v556, %v554
  %v593 = vpack.c.b16 %v557, %v555
  %v594 = vpack.c.b16 %v560, %v558
  %v595 = vpack.c.b16 %v561, %v559
  %v596 = vpack.c.b16 %v564, %v562
  %v597 = vpack.c.b16 %v565, %v563
  %v598 = vpack.c.b16 %v568, %v566
  %v599 = vpack.c.b16 %v569, %v567
  %v600 = vpack.c.b16 %v572, %v570
  %v601 = vpack.c.b16 %v573, %v571
  %v602 = vpack.c.b16 %v576, %v574
  %v603 = vpack.c.b16 %v577, %v575
  %v604 = vpack.c.b16 %v580, %v578
  %v605 = vpack.c.b16 %v581, %v579
  %630 = vmatprep.subr.bf16.mxu0 %v597
  %631 = vmatpush1.bf16.msra.mxu0 %v596
  %632 = vmatprep.subr.bf16.mxu0 %v595
  %633 = vmatpush1.bf16.msra.mxu0 %v594
  %634 = vmatprep.subr.bf16.mxu0 %v593
  %635 = vmatpush1.bf16.msra.mxu0 %v592
  %636 = vmatprep.subr.bf16.mxu0 %v591
  %637 = vmatpush1.bf16.msra.mxu0 %v590
  %638 = vmatprep.subr.bf16.mxu0 %v589
  %639 = vmatpush1.bf16.msra.mxu0 %v588
  %640 = vmatprep.subr.bf16.mxu0 %v587
  %641 = vmatpush1.bf16.msra.mxu0 %v586
  %642 = vmatprep.subr.bf16.mxu0 %v585
  %643 = vmatpush1.bf16.msra.mxu0 %v584
  %644 = vmatprep.subr.bf16.mxu0 %v583
  %645 = vmatpush1.bf16.msra.mxu0 %v582
  %646 = vmatprep.subr.bf16.mxu0 0
  %647 = vmatpush2.bf16.msra.mxu0 0
  %648 = vmatprep.subr.bf16.mxu0 0
  %649 = vmatpush2.bf16.msra.mxu0 0
  %650 = vmatprep.subr.bf16.mxu0 0
  %651 = vmatpush2.bf16.msra.mxu0 0
  %652 = vmatprep.subr.bf16.mxu0 0
  %653 = vmatpush2.bf16.msra.mxu0 0
  %654 = vmatprep.subr.bf16.mxu0 %v605
  %655 = vmatpush2.bf16.msra.mxu0 %v604
  %656 = vmatprep.subr.bf16.mxu0 %v603
  %657 = vmatpush2.bf16.msra.mxu0 %v602
  %658 = vmatprep.subr.bf16.mxu0 %v601
  %659 = vmatpush2.bf16.msra.mxu0 %v600
  %660 = vmatprep.subr.bf16.mxu0 %v599
  %661 = vmatpush2.bf16.msra.mxu0 %v598
  %662 = vmatprep.mubr.bf16.mxu0 %v255
  %663 = vmatmul.mubr.bf16.gmra.mxu0 %v115
  %v664 = vpop.f32.mrf.mxu0
  %v665 = vadd.f32 %v72, %v664
  %v666 = vpop.f32.mrf.mxu0
  %v667 = vadd.f32 %v76, %v666
  %v668 = vpop.f32.mrf.mxu0
  %v669 = vadd.f32 %v72, %v668
  %v670 = vpop.f32.mrf.mxu0
  %v671 = vadd.f32 %v76, %v670
  %672 = vmatprep.mubr.bf16.mxu0 %v258
  %673 = vmatmul.mubr.bf16.gmra.mxu0 %v117
  %v674 = vpop.f32.mrf.mxu0
  %v675 = vadd.f32 %v72, %v674
  %v676 = vpop.f32.mrf.mxu0
  %v677 = vadd.f32 %v76, %v676
  %v678 = vpop.f32.mrf.mxu0
  %v679 = vadd.f32 %v72, %v678
  %v680 = vpop.f32.mrf.mxu0
  %v681 = vadd.f32 %v76, %v680
  %682 = vmatprep.mubr.bf16.mxu0 %v261
  %683 = vmatmul.mubr.bf16.gmra.mxu0 %v119
  %v684 = vpop.f32.mrf.mxu0
  %v685 = vadd.f32 %v72, %v684
  %v686 = vpop.f32.mrf.mxu0
  %v687 = vadd.f32 %v76, %v686
  %v688 = vpop.f32.mrf.mxu0
  %v689 = vadd.f32 %v72, %v688
  %v690 = vpop.f32.mrf.mxu0
  %v691 = vadd.f32 %v76, %v690
  %692 = vmatprep.mubr.bf16.mxu0 %v264
  %693 = vmatmul.mubr.bf16.gmra.mxu0 %v121
  %v694 = vpop.f32.mrf.mxu0
  %v695 = vadd.f32 %v72, %v694
  %v696 = vpop.f32.mrf.mxu0
  %v697 = vadd.f32 %v76, %v696
  %v698 = vpop.f32.mrf.mxu0
  %v699 = vadd.f32 %v72, %v698
  %v700 = vpop.f32.mrf.mxu0
  %v701 = vadd.f32 %v76, %v700
  %702 = vmatprep.mubr.bf16.mxu0 %v267
  %703 = vmatmul.mubr.bf16.gmra.mxu0 %v123
  %v704 = vpop.f32.mrf.mxu0
  %v705 = vadd.f32 %v72, %v704
  %v706 = vpop.f32.mrf.mxu0
  %v707 = vadd.f32 %v76, %v706
  %v708 = vpop.f32.mrf.mxu0
  %v709 = vadd.f32 %v72, %v708
  %v710 = vpop.f32.mrf.mxu0
  %v711 = vadd.f32 %v76, %v710
  %712 = vmatprep.mubr.bf16.mxu0 %v270
  %713 = vmatmul.mubr.bf16.gmra.mxu0 %v125
  %v714 = vpop.f32.mrf.mxu0
  %v715 = vadd.f32 %v72, %v714
  %v716 = vpop.f32.mrf.mxu0
  %v717 = vadd.f32 %v76, %v716
  %v718 = vpop.f32.mrf.mxu0
  %v719 = vadd.f32 %v72, %v718
  %v720 = vpop.f32.mrf.mxu0
  %v721 = vadd.f32 %v76, %v720
  %722 = vdwg.mxu0
  %v723 = vpack.c.bf16 %v669, %v665
  %v724 = vpack.c.bf16 %v671, %v667
  %v725 = vpack.c.bf16 %v679, %v675
  %v726 = vpack.c.bf16 %v681, %v677
  %v727 = vpack.c.bf16 %v689, %v685
  %v728 = vpack.c.bf16 %v691, %v687
  %v729 = vpack.c.bf16 %v699, %v695
  %v730 = vpack.c.bf16 %v701, %v697
  %v731 = vpack.c.bf16 %v709, %v705
  %v732 = vpack.c.bf16 %v711, %v707
  %v733 = vpack.c.bf16 %v719, %v715
  %v734 = vpack.c.bf16 %v721, %v717
  %v735 = vmul.bf16 %v723, 1056980736
  %v736 = vmul.bf16 %v724, 1056980736
  %v737 = vmul.bf16 %v725, 1056980736
  %v738 = vmul.bf16 %v726, 1056980736
  %v739 = vmul.bf16 %v727, 1056980736
  %v740 = vmul.bf16 %v728, 1056980736
  %v741 = vmul.bf16 %v729, 1056980736
  %v742 = vmul.bf16 %v730, 1056980736
  %v743 = vmul.bf16 %v731, 1056980736
  %v744 = vmul.bf16 %v732, 1056980736
  %v745 = vmul.bf16 %v733, 1056980736
  %v746 = vmul.bf16 %v734, 1056980736
  %v747 = vmul.bf16 %v723, 1027030327
  %v748 = vmul.bf16 %v724, 1027030327
  %v749 = vmul.bf16 %v725, 1027030327
  %v750 = vmul.bf16 %v726, 1027030327
  %v751 = vmul.bf16 %v727, 1027030327
  %v752 = vmul.bf16 %v728, 1027030327
  %v753 = vmul.bf16 %v729, 1027030327
  %v754 = vmul.bf16 %v730, 1027030327
  %v755 = vmul.bf16 %v731, 1027030327
  %v756 = vmul.bf16 %v732, 1027030327
  %v757 = vmul.bf16 %v733, 1027030327
  %v758 = vmul.bf16 %v734, 1027030327
  %v759 = vmul.bf16 %v747, %v723
  %v760 = vmul.bf16 %v748, %v724
  %v761 = vmul.bf16 %v749, %v725
  %v762 = vmul.bf16 %v750, %v726
  %v763 = vmul.bf16 %v751, %v727
  %v764 = vmul.bf16 %v752, %v728
  %v765 = vmul.bf16 %v753, %v729
  %v766 = vmul.bf16 %v754, %v730
  %v767 = vmul.bf16 %v755, %v731
  %v768 = vmul.bf16 %v756, %v732
  %v769 = vmul.bf16 %v757, %v733
  %v770 = vmul.bf16 %v758, %v734
  %v771 = vmul.bf16 %v759, %v723
  %v772 = vmul.bf16 %v760, %v724
  %v773 = vmul.bf16 %v761, %v725
  %v774 = vmul.bf16 %v762, %v726
  %v775 = vmul.bf16 %v763, %v727
  %v776 = vmul.bf16 %v764, %v728
  %v777 = vmul.bf16 %v765, %v729
  %v778 = vmul.bf16 %v766, %v730
  %v779 = vmul.bf16 %v767, %v731
  %v780 = vmul.bf16 %v768, %v732
  %v781 = vmul.bf16 %v769, %v733
  %v782 = vmul.bf16 %v770, %v734
  %v783 = vadd.bf16 %v723, %v771
  %v784 = vadd.bf16 %v724, %v772
  %v785 = vadd.bf16 %v725, %v773
  %v786 = vadd.bf16 %v726, %v774
  %v787 = vadd.bf16 %v727, %v775
  %v788 = vadd.bf16 %v728, %v776
  %v789 = vadd.bf16 %v729, %v777
  %v790 = vadd.bf16 %v730, %v778
  %v791 = vadd.bf16 %v731, %v779
  %v792 = vadd.bf16 %v732, %v780
  %v793 = vadd.bf16 %v733, %v781
  %v794 = vadd.bf16 %v734, %v782
  %v795 = vmul.bf16 %v783, 1061961548
  %v796 = vmul.bf16 %v784, 1061961548
  %v797 = vmul.bf16 %v785, 1061961548
  %v798 = vmul.bf16 %v786, 1061961548
  %v799 = vmul.bf16 %v787, 1061961548
  %v800 = vmul.bf16 %v788, 1061961548
  %v801 = vmul.bf16 %v789, 1061961548
  %v802 = vmul.bf16 %v790, 1061961548
  %v803 = vmul.bf16 %v791, 1061961548
  %v804 = vmul.bf16 %v792, 1061961548
  %v805 = vmul.bf16 %v793, 1061961548
  %v806 = vmul.bf16 %v794, 1061961548
  %v807 = vtanh.bf16.pop %v795
  %v808 = vtanh.bf16.pop %v796
  %v809 = vtanh.bf16.pop %v797
  %v810 = vtanh.bf16.pop %v798
  %v811 = vtanh.bf16.pop %v799
  %v812 = vtanh.bf16.pop %v800
  %v813 = vtanh.bf16.pop %v801
  %v814 = vtanh.bf16.pop %v802
  %v815 = vtanh.bf16.pop %v803
  %v816 = vtanh.bf16.pop %v804
  %v817 = vtanh.bf16.pop %v805
  %v818 = vtanh.bf16.pop %v806
  %v819 = vadd.bf16 %v807, 1065369472
  %v820 = vadd.bf16 %v808, 1065369472
  %v821 = vadd.bf16 %v809, 1065369472
  %v822 = vadd.bf16 %v810, 1065369472
  %v823 = vadd.bf16 %v811, 1065369472
  %v824 = vadd.bf16 %v812, 1065369472
  %v825 = vadd.bf16 %v813, 1065369472
  %v826 = vadd.bf16 %v814, 1065369472
  %v827 = vadd.bf16 %v815, 1065369472
  %v828 = vadd.bf16 %v816, 1065369472
  %v829 = vadd.bf16 %v817, 1065369472
  %v830 = vadd.bf16 %v818, 1065369472
  %v831 = vmul.bf16 %v735, %v819
  %v832 = vmul.bf16 %v736, %v820
  %v833 = vmul.bf16 %v737, %v821
  %v834 = vmul.bf16 %v738, %v822
  %v835 = vmul.bf16 %v739, %v823
  %v836 = vmul.bf16 %v740, %v824
  %v837 = vmul.bf16 %v741, %v825
  %v838 = vmul.bf16 %v742, %v826
  %v839 = vmul.bf16 %v743, %v827
  %v840 = vmul.bf16 %v744, %v828
  %v841 = vmul.bf16 %v745, %v829
  %v842 = vmul.bf16 %v746, %v830
  %v843 = vmax.bf16 %v473, %v831
  %v844 = vmax.bf16 %v474, %v832
  %v845 = vmax.bf16 %v475, %v833
  %v846 = vmax.bf16 %v476, %v834
  %v847 = vmax.bf16 %v477, %v835
  %v848 = vmax.bf16 %v478, %v836
  %v849 = vmax.bf16 %v479, %v837
  %v850 = vmax.bf16 %v480, %v838
  %v851 = vmax.bf16 %v481, %v839
  %v852 = vmax.bf16 %v482, %v840
  %v853 = vmax.bf16 %v483, %v841
  %v854 = vmax.bf16 %v484, %v842
  %s855 = scalar_lea.vmem %s1, 384
  %v856 = vld [vmem:[%s855] sm:$0xff]
  %v857 = vld [vmem:[%s855 + $0x8] sm:$0xff]
  %v858 = vld [vmem:[%s855 + $0x10] sm:$0xff]
  %v859 = vld [vmem:[%s855 + $0x18] sm:$0xff]
  %v860 = vld [vmem:[%s855 + $0x20] sm:$0xff]
  %v861 = vld [vmem:[%s855 + $0x28] sm:$0xff]
  %v862 = vld [vmem:[%s855 + $0x30] sm:$0xff]
  %v863 = vld [vmem:[%s855 + $0x38] sm:$0xff]
  %v864 = vld [vmem:[%s855 + $0x40] sm:$0xff]
  %v865 = vld [vmem:[%s855 + $0x48] sm:$0xff]
  %v866 = vld [vmem:[%s855 + $0x50] sm:$0xff]
  %v867 = vld [vmem:[%s855 + $0x58] sm:$0xff]
  %v868 = vld [vmem:[%s855 + $0x60] sm:$0xff]
  %v869 = vld [vmem:[%s855 + $0x68] sm:$0xff]
  %v870 = vld [vmem:[%s855 + $0x70] sm:$0xff]
  %v871 = vld [vmem:[%s855 + $0x78] sm:$0xff]
  %v872 = vld [vmem:[%s855 + $0x80] sm:$0xff]
  %v873 = vld [vmem:[%s855 + $0x88] sm:$0xff]
  %v874 = vld [vmem:[%s855 + $0x90] sm:$0xff]
  %v875 = vld [vmem:[%s855 + $0x98] sm:$0xff]
  %v876 = vld [vmem:[%s855 + $0xa0] sm:$0xff]
  %v877 = vld [vmem:[%s855 + $0xa8] sm:$0xff]
  %v878 = vld [vmem:[%s855 + $0xb0] sm:$0xff]
  %v879 = vld [vmem:[%s855 + $0xb8] sm:$0xff]
  %v904 = vunpack.c.l.b16 %v856
  %v905 = vunpack.c.h.b16 %v856
  %v906 = vunpack.c.l.b16 %v857
  %v907 = vunpack.c.h.b16 %v857
  %v908 = vunpack.c.l.b16 %v858
  %v909 = vunpack.c.h.b16 %v858
  %v910 = vunpack.c.l.b16 %v859
  %v911 = vunpack.c.h.b16 %v859
  %v912 = vunpack.c.l.b16 %v860
  %v913 = vunpack.c.h.b16 %v860
  %v914 = vunpack.c.l.b16 %v861
  %v915 = vunpack.c.h.b16 %v861
  %v916 = vunpack.c.l.b16 %v862
  %v917 = vunpack.c.h.b16 %v862
  %v918 = vunpack.c.l.b16 %v863
  %v919 = vunpack.c.h.b16 %v863
  %v920 = vunpack.c.l.b16 %v864
  %v921 = vunpack.c.h.b16 %v864
  %v922 = vunpack.c.l.b16 %v865
  %v923 = vunpack.c.h.b16 %v865
  %v924 = vunpack.c.l.b16 %v866
  %v925 = vunpack.c.h.b16 %v866
  %v926 = vunpack.c.l.b16 %v867
  %v927 = vunpack.c.h.b16 %v867
  %v928 = vunpack.c.l.b16 %v868
  %v929 = vunpack.c.h.b16 %v868
  %v930 = vunpack.c.l.b16 %v869
  %v931 = vunpack.c.h.b16 %v869
  %v932 = vunpack.c.l.b16 %v870
  %v933 = vunpack.c.h.b16 %v870
  %v934 = vunpack.c.l.b16 %v871
  %v935 = vunpack.c.h.b16 %v871
  %v936 = vunpack.c.l.b16 %v872
  %v937 = vunpack.c.h.b16 %v872
  %v938 = vunpack.c.l.b16 %v873
  %v939 = vunpack.c.h.b16 %v873
  %v940 = vunpack.c.l.b16 %v874
  %v941 = vunpack.c.h.b16 %v874
  %v942 = vunpack.c.l.b16 %v875
  %v943 = vunpack.c.h.b16 %v875
  %v944 = vunpack.c.l.b16 %v876
  %v945 = vunpack.c.h.b16 %v876
  %v946 = vunpack.c.l.b16 %v877
  %v947 = vunpack.c.h.b16 %v877
  %v948 = vunpack.c.l.b16 %v878
  %v949 = vunpack.c.h.b16 %v878
  %v950 = vunpack.c.l.b16 %v879
  %v951 = vunpack.c.h.b16 %v879
  %v952 = vpack.c.b16 %v906, %v904
  %v953 = vpack.c.b16 %v907, %v905
  %v954 = vpack.c.b16 %v910, %v908
  %v955 = vpack.c.b16 %v911, %v909
  %v956 = vpack.c.b16 %v914, %v912
  %v957 = vpack.c.b16 %v915, %v913
  %v958 = vpack.c.b16 %v918, %v916
  %v959 = vpack.c.b16 %v919, %v917
  %v960 = vpack.c.b16 %v922, %v920
  %v961 = vpack.c.b16 %v923, %v921
  %v962 = vpack.c.b16 %v926, %v924
  %v963 = vpack.c.b16 %v927, %v925
  %v964 = vpack.c.b16 %v930, %v928
  %v965 = vpack.c.b16 %v931, %v929
  %v966 = vpack.c.b16 %v934, %v932
  %v967 = vpack.c.b16 %v935, %v933
  %v968 = vpack.c.b16 %v938, %v936
  %v969 = vpack.c.b16 %v939, %v937
  %v970 = vpack.c.b16 %v942, %v940
  %v971 = vpack.c.b16 %v943, %v941
  %v972 = vpack.c.b16 %v946, %v944
  %v973 = vpack.c.b16 %v947, %v945
  %v974 = vpack.c.b16 %v950, %v948
  %v975 = vpack.c.b16 %v951, %v949
  %1000 = vmatprep.subr.bf16.mxu0 %v967
  %1001 = vmatpush1.bf16.msra.mxu0 %v966
  %1002 = vmatprep.subr.bf16.mxu0 %v965
  %1003 = vmatpush1.bf16.msra.mxu0 %v964
  %1004 = vmatprep.subr.bf16.mxu0 %v963
  %1005 = vmatpush1.bf16.msra.mxu0 %v962
  %1006 = vmatprep.subr.bf16.mxu0 %v961
  %1007 = vmatpush1.bf16.msra.mxu0 %v960
  %1008 = vmatprep.subr.bf16.mxu0 %v959
  %1009 = vmatpush1.bf16.msra.mxu0 %v958
  %1010 = vmatprep.subr.bf16.mxu0 %v957
  %1011 = vmatpush1.bf16.msra.mxu0 %v956
  %1012 = vmatprep.subr.bf16.mxu0 %v955
  %1013 = vmatpush1.bf16.msra.mxu0 %v954
  %1014 = vmatprep.subr.bf16.mxu0 %v953
  %1015 = vmatpush1.bf16.msra.mxu0 %v952
  %1016 = vmatprep.subr.bf16.mxu0 0
  %1017 = vmatpush2.bf16.msra.mxu0 0
  %1018 = vmatprep.subr.bf16.mxu0 0
  %1019 = vmatpush2.bf16.msra.mxu0 0
  %1020 = vmatprep.subr.bf16.mxu0 0
  %1021 = vmatpush2.bf16.msra.mxu0 0
  %1022 = vmatprep.subr.bf16.mxu0 0
  %1023 = vmatpush2.bf16.msra.mxu0 0
  %1024 = vmatprep.subr.bf16.mxu0 %v975
  %1025 = vmatpush2.bf16.msra.mxu0 %v974
  %1026 = vmatprep.subr.bf16.mxu0 %v973
  %1027 = vmatpush2.bf16.msra.mxu0 %v972
  %1028 = vmatprep.subr.bf16.mxu0 %v971
  %1029 = vmatpush2.bf16.msra.mxu0 %v970
  %1030 = vmatprep.subr.bf16.mxu0 %v969
  %1031 = vmatpush2.bf16.msra.mxu0 %v968
  %1032 = vmatprep.mubr.bf16.mxu0 %v255
  %1033 = vmatmul.mubr.bf16.gmra.mxu0 %v115
  %v1034 = vpop.f32.mrf.mxu0
  %v1035 = vadd.f32 %v72, %v1034
  %v1036 = vpop.f32.mrf.mxu0
  %v1037 = vadd.f32 %v76, %v1036
  %v1038 = vpop.f32.mrf.mxu0
  %v1039 = vadd.f32 %v72, %v1038
  %v1040 = vpop.f32.mrf.mxu0
  %v1041 = vadd.f32 %v76, %v1040
  %1042 = vmatprep.mubr.bf16.mxu0 %v258
  %1043 = vmatmul.mubr.bf16.gmra.mxu0 %v117
  %v1044 = vpop.f32.mrf.mxu0
  %v1045 = vadd.f32 %v72, %v1044
  %v1046 = vpop.f32.mrf.mxu0
  %v1047 = vadd.f32 %v76, %v1046
  %v1048 = vpop.f32.mrf.mxu0
  %v1049 = vadd.f32 %v72, %v1048
  %v1050 = vpop.f32.mrf.mxu0
  %v1051 = vadd.f32 %v76, %v1050
  %1052 = vmatprep.mubr.bf16.mxu0 %v261
  %1053 = vmatmul.mubr.bf16.gmra.mxu0 %v119
  %v1054 = vpop.f32.mrf.mxu0
  %v1055 = vadd.f32 %v72, %v1054
  %v1056 = vpop.f32.mrf.mxu0
  %v1057 = vadd.f32 %v76, %v1056
  %v1058 = vpop.f32.mrf.mxu0
  %v1059 = vadd.f32 %v72, %v1058
  %v1060 = vpop.f32.mrf.mxu0
  %v1061 = vadd.f32 %v76, %v1060
  %1062 = vmatprep.mubr.bf16.mxu0 %v264
  %1063 = vmatmul.mubr.bf16.gmra.mxu0 %v121
  %v1064 = vpop.f32.mrf.mxu0
  %v1065 = vadd.f32 %v72, %v1064
  %v1066 = vpop.f32.mrf.mxu0
  %v1067 = vadd.f32 %v76, %v1066
  %v1068 = vpop.f32.mrf.mxu0
  %v1069 = vadd.f32 %v72, %v1068
  %v1070 = vpop.f32.mrf.mxu0
  %v1071 = vadd.f32 %v76, %v1070
  %1072 = vmatprep.mubr.bf16.mxu0 %v267
  %1073 = vmatmul.mubr.bf16.gmra.mxu0 %v123
  %v1074 = vpop.f32.mrf.mxu0
  %v1075 = vadd.f32 %v72, %v1074
  %v1076 = vpop.f32.mrf.mxu0
  %v1077 = vadd.f32 %v76, %v1076
  %v1078 = vpop.f32.mrf.mxu0
  %v1079 = vadd.f32 %v72, %v1078
  %v1080 = vpop.f32.mrf.mxu0
  %v1081 = vadd.f32 %v76, %v1080
  %1082 = vmatprep.mubr.bf16.mxu0 %v270
  %1083 = vmatmul.mubr.bf16.gmra.mxu0 %v125
  %v1084 = vpop.f32.mrf.mxu0
  %v1085 = vadd.f32 %v72, %v1084
  %v1086 = vpop.f32.mrf.mxu0
  %v1087 = vadd.f32 %v76, %v1086
  %v1088 = vpop.f32.mrf.mxu0
  %v1089 = vadd.f32 %v72, %v1088
  %v1090 = vpop.f32.mrf.mxu0
  %v1091 = vadd.f32 %v76, %v1090
  %1092 = vdwg.mxu0
  %v1093 = vpack.c.bf16 %v1039, %v1035
  %v1094 = vpack.c.bf16 %v1041, %v1037
  %v1095 = vpack.c.bf16 %v1049, %v1045
  %v1096 = vpack.c.bf16 %v1051, %v1047
  %v1097 = vpack.c.bf16 %v1059, %v1055
  %v1098 = vpack.c.bf16 %v1061, %v1057
  %v1099 = vpack.c.bf16 %v1069, %v1065
  %v1100 = vpack.c.bf16 %v1071, %v1067
  %v1101 = vpack.c.bf16 %v1079, %v1075
  %v1102 = vpack.c.bf16 %v1081, %v1077
  %v1103 = vpack.c.bf16 %v1089, %v1085
  %v1104 = vpack.c.bf16 %v1091, %v1087
  %v1105 = vmul.bf16 %v1093, 1056980736
  %v1106 = vmul.bf16 %v1094, 1056980736
  %v1107 = vmul.bf16 %v1095, 1056980736
  %v1108 = vmul.bf16 %v1096, 1056980736
  %v1109 = vmul.bf16 %v1097, 1056980736
  %v1110 = vmul.bf16 %v1098, 1056980736
  %v1111 = vmul.bf16 %v1099, 1056980736
  %v1112 = vmul.bf16 %v1100, 1056980736
  %v1113 = vmul.bf16 %v1101, 1056980736
  %v1114 = vmul.bf16 %v1102, 1056980736
  %v1115 = vmul.bf16 %v1103, 1056980736
  %v1116 = vmul.bf16 %v1104, 1056980736
  %v1117 = vmul.bf16 %v1093, 1027030327
  %v1118 = vmul.bf16 %v1094, 1027030327
  %v1119 = vmul.bf16 %v1095, 1027030327
  %v1120 = vmul.bf16 %v1096, 1027030327
  %v1121 = vmul.bf16 %v1097, 1027030327
  %v1122 = vmul.bf16 %v1098, 1027030327
  %v1123 = vmul.bf16 %v1099, 1027030327
  %v1124 = vmul.bf16 %v1100, 1027030327
  %v1125 = vmul.bf16 %v1101, 1027030327
  %v1126 = vmul.bf16 %v1102, 1027030327
  %v1127 = vmul.bf16 %v1103, 1027030327
  %v1128 = vmul.bf16 %v1104, 1027030327
  %v1129 = vmul.bf16 %v1117, %v1093
  %v1130 = vmul.bf16 %v1118, %v1094
  %v1131 = vmul.bf16 %v1119, %v1095
  %v1132 = vmul.bf16 %v1120, %v1096
  %v1133 = vmul.bf16 %v1121, %v1097
  %v1134 = vmul.bf16 %v1122, %v1098
  %v1135 = vmul.bf16 %v1123, %v1099
  %v1136 = vmul.bf16 %v1124, %v1100
  %v1137 = vmul.bf16 %v1125, %v1101
  %v1138 = vmul.bf16 %v1126, %v1102
  %v1139 = vmul.bf16 %v1127, %v1103
  %v1140 = vmul.bf16 %v1128, %v1104
  %v1141 = vmul.bf16 %v1129, %v1093
  %v1142 = vmul.bf16 %v1130, %v1094
  %v1143 = vmul.bf16 %v1131, %v1095
  %v1144 = vmul.bf16 %v1132, %v1096
  %v1145 = vmul.bf16 %v1133, %v1097
  %v1146 = vmul.bf16 %v1134, %v1098
  %v1147 = vmul.bf16 %v1135, %v1099
  %v1148 = vmul.bf16 %v1136, %v1100
  %v1149 = vmul.bf16 %v1137, %v1101
  %v1150 = vmul.bf16 %v1138, %v1102
  %v1151 = vmul.bf16 %v1139, %v1103
  %v1152 = vmul.bf16 %v1140, %v1104
  %v1153 = vadd.bf16 %v1093, %v1141
  %v1154 = vadd.bf16 %v1094, %v1142
  %v1155 = vadd.bf16 %v1095, %v1143
  %v1156 = vadd.bf16 %v1096, %v1144
  %v1157 = vadd.bf16 %v1097, %v1145
  %v1158 = vadd.bf16 %v1098, %v1146
  %v1159 = vadd.bf16 %v1099, %v1147
  %v1160 = vadd.bf16 %v1100, %v1148
  %v1161 = vadd.bf16 %v1101, %v1149
  %v1162 = vadd.bf16 %v1102, %v1150
  %v1163 = vadd.bf16 %v1103, %v1151
  %v1164 = vadd.bf16 %v1104, %v1152
  %v1165 = vmul.bf16 %v1153, 1061961548
  %v1166 = vmul.bf16 %v1154, 1061961548
  %v1167 = vmul.bf16 %v1155, 1061961548
  %v1168 = vmul.bf16 %v1156, 1061961548
  %v1169 = vmul.bf16 %v1157, 1061961548
  %v1170 = vmul.bf16 %v1158, 1061961548
  %v1171 = vmul.bf16 %v1159, 1061961548
  %v1172 = vmul.bf16 %v1160, 1061961548
  %v1173 = vmul.bf16 %v1161, 1061961548
  %v1174 = vmul.bf16 %v1162, 1061961548
  %v1175 = vmul.bf16 %v1163, 1061961548
  %v1176 = vmul.bf16 %v1164, 1061961548
  %v1177 = vtanh.bf16.pop %v1165
  %v1178 = vtanh.bf16.pop %v1166
  %v1179 = vtanh.bf16.pop %v1167
  %v1180 = vtanh.bf16.pop %v1168
  %v1181 = vtanh.bf16.pop %v1169
  %v1182 = vtanh.bf16.pop %v1170
  %v1183 = vtanh.bf16.pop %v1171
  %v1184 = vtanh.bf16.pop %v1172
  %v1185 = vtanh.bf16.pop %v1173
  %v1186 = vtanh.bf16.pop %v1174
  %v1187 = vtanh.bf16.pop %v1175
  %v1188 = vtanh.bf16.pop %v1176
  %v1189 = vadd.bf16 %v1177, 1065369472
  %v1190 = vadd.bf16 %v1178, 1065369472
  %v1191 = vadd.bf16 %v1179, 1065369472
  %v1192 = vadd.bf16 %v1180, 1065369472
  %v1193 = vadd.bf16 %v1181, 1065369472
  %v1194 = vadd.bf16 %v1182, 1065369472
  %v1195 = vadd.bf16 %v1183, 1065369472
  %v1196 = vadd.bf16 %v1184, 1065369472
  %v1197 = vadd.bf16 %v1185, 1065369472
  %v1198 = vadd.bf16 %v1186, 1065369472
  %v1199 = vadd.bf16 %v1187, 1065369472
  %v1200 = vadd.bf16 %v1188, 1065369472
  %v1201 = vmul.bf16 %v1105, %v1189
  %v1202 = vmul.bf16 %v1106, %v1190
  %v1203 = vmul.bf16 %v1107, %v1191
  %v1204 = vmul.bf16 %v1108, %v1192
  %v1205 = vmul.bf16 %v1109, %v1193
  %v1206 = vmul.bf16 %v1110, %v1194
  %v1207 = vmul.bf16 %v1111, %v1195
  %v1208 = vmul.bf16 %v1112, %v1196
  %v1209 = vmul.bf16 %v1113, %v1197
  %v1210 = vmul.bf16 %v1114, %v1198
  %v1211 = vmul.bf16 %v1115, %v1199
  %v1212 = vmul.bf16 %v1116, %v1200
  %v1213 = vmax.bf16 %v843, %v1201
  %v1214 = vmax.bf16 %v844, %v1202
  %v1215 = vmax.bf16 %v845, %v1203
  %v1216 = vmax.bf16 %v846, %v1204
  %v1217 = vmax.bf16 %v847, %v1205
  %v1218 = vmax.bf16 %v848, %v1206
  %v1219 = vmax.bf16 %v849, %v1207
  %v1220 = vmax.bf16 %v850, %v1208
  %v1221 = vmax.bf16 %v851, %v1209
  %v1222 = vmax.bf16 %v852, %v1210
  %v1223 = vmax.bf16 %v853, %v1211
  %v1224 = vmax.bf16 %v854, %v1212
  %s1225 = scalar_lea.vmem %s1, 576
  %v1226 = vld [vmem:[%s1225] sm:$0xff]
  %v1227 = vld [vmem:[%s1225 + $0x8] sm:$0xff]
  %v1228 = vld [vmem:[%s1225 + $0x10] sm:$0xff]
  %v1229 = vld [vmem:[%s1225 + $0x18] sm:$0xff]
  %v1230 = vld [vmem:[%s1225 + $0x20] sm:$0xff]
  %v1231 = vld [vmem:[%s1225 + $0x28] sm:$0xff]
  %v1232 = vld [vmem:[%s1225 + $0x30] sm:$0xff]
  %v1233 = vld [vmem:[%s1225 + $0x38] sm:$0xff]
  %v1234 = vld [vmem:[%s1225 + $0x40] sm:$0xff]
  %v1235 = vld [vmem:[%s1225 + $0x48] sm:$0xff]
  %v1236 = vld [vmem:[%s1225 + $0x50] sm:$0xff]
  %v1237 = vld [vmem:[%s1225 + $0x58] sm:$0xff]
  %v1238 = vld [vmem:[%s1225 + $0x60] sm:$0xff]
  %v1239 = vld [vmem:[%s1225 + $0x68] sm:$0xff]
  %v1240 = vld [vmem:[%s1225 + $0x70] sm:$0xff]
  %v1241 = vld [vmem:[%s1225 + $0x78] sm:$0xff]
  %v1242 = vld [vmem:[%s1225 + $0x80] sm:$0xff]
  %v1243 = vld [vmem:[%s1225 + $0x88] sm:$0xff]
  %v1244 = vld [vmem:[%s1225 + $0x90] sm:$0xff]
  %v1245 = vld [vmem:[%s1225 + $0x98] sm:$0xff]
  %v1246 = vld [vmem:[%s1225 + $0xa0] sm:$0xff]
  %v1247 = vld [vmem:[%s1225 + $0xa8] sm:$0xff]
  %v1248 = vld [vmem:[%s1225 + $0xb0] sm:$0xff]
  %v1249 = vld [vmem:[%s1225 + $0xb8] sm:$0xff]
  %v1274 = vunpack.c.l.b16 %v1226
  %v1275 = vunpack.c.h.b16 %v1226
  %v1276 = vunpack.c.l.b16 %v1227
  %v1277 = vunpack.c.h.b16 %v1227
  %v1278 = vunpack.c.l.b16 %v1228
  %v1279 = vunpack.c.h.b16 %v1228
  %v1280 = vunpack.c.l.b16 %v1229
  %v1281 = vunpack.c.h.b16 %v1229
  %v1282 = vunpack.c.l.b16 %v1230
  %v1283 = vunpack.c.h.b16 %v1230
  %v1284 = vunpack.c.l.b16 %v1231
  %v1285 = vunpack.c.h.b16 %v1231
  %v1286 = vunpack.c.l.b16 %v1232
  %v1287 = vunpack.c.h.b16 %v1232
  %v1288 = vunpack.c.l.b16 %v1233
  %v1289 = vunpack.c.h.b16 %v1233
  %v1290 = vunpack.c.l.b16 %v1234
  %v1291 = vunpack.c.h.b16 %v1234
  %v1292 = vunpack.c.l.b16 %v1235
  %v1293 = vunpack.c.h.b16 %v1235
  %v1294 = vunpack.c.l.b16 %v1236
  %v1295 = vunpack.c.h.b16 %v1236
  %v1296 = vunpack.c.l.b16 %v1237
  %v1297 = vunpack.c.h.b16 %v1237
  %v1298 = vunpack.c.l.b16 %v1238
  %v1299 = vunpack.c.h.b16 %v1238
  %v1300 = vunpack.c.l.b16 %v1239
  %v1301 = vunpack.c.h.b16 %v1239
  %v1302 = vunpack.c.l.b16 %v1240
  %v1303 = vunpack.c.h.b16 %v1240
  %v1304 = vunpack.c.l.b16 %v1241
  %v1305 = vunpack.c.h.b16 %v1241
  %v1306 = vunpack.c.l.b16 %v1242
  %v1307 = vunpack.c.h.b16 %v1242
  %v1308 = vunpack.c.l.b16 %v1243
  %v1309 = vunpack.c.h.b16 %v1243
  %v1310 = vunpack.c.l.b16 %v1244
  %v1311 = vunpack.c.h.b16 %v1244
  %v1312 = vunpack.c.l.b16 %v1245
  %v1313 = vunpack.c.h.b16 %v1245
  %v1314 = vunpack.c.l.b16 %v1246
  %v1315 = vunpack.c.h.b16 %v1246
  %v1316 = vunpack.c.l.b16 %v1247
  %v1317 = vunpack.c.h.b16 %v1247
  %v1318 = vunpack.c.l.b16 %v1248
  %v1319 = vunpack.c.h.b16 %v1248
  %v1320 = vunpack.c.l.b16 %v1249
  %v1321 = vunpack.c.h.b16 %v1249
  %v1322 = vpack.c.b16 %v1276, %v1274
  %v1323 = vpack.c.b16 %v1277, %v1275
  %v1324 = vpack.c.b16 %v1280, %v1278
  %v1325 = vpack.c.b16 %v1281, %v1279
  %v1326 = vpack.c.b16 %v1284, %v1282
  %v1327 = vpack.c.b16 %v1285, %v1283
  %v1328 = vpack.c.b16 %v1288, %v1286
  %v1329 = vpack.c.b16 %v1289, %v1287
  %v1330 = vpack.c.b16 %v1292, %v1290
  %v1331 = vpack.c.b16 %v1293, %v1291
  %v1332 = vpack.c.b16 %v1296, %v1294
  %v1333 = vpack.c.b16 %v1297, %v1295
  %v1334 = vpack.c.b16 %v1300, %v1298
  %v1335 = vpack.c.b16 %v1301, %v1299
  %v1336 = vpack.c.b16 %v1304, %v1302
  %v1337 = vpack.c.b16 %v1305, %v1303
  %v1338 = vpack.c.b16 %v1308, %v1306
  %v1339 = vpack.c.b16 %v1309, %v1307
  %v1340 = vpack.c.b16 %v1312, %v1310
  %v1341 = vpack.c.b16 %v1313, %v1311
  %v1342 = vpack.c.b16 %v1316, %v1314
  %v1343 = vpack.c.b16 %v1317, %v1315
  %v1344 = vpack.c.b16 %v1320, %v1318
  %v1345 = vpack.c.b16 %v1321, %v1319
  %1370 = vmatprep.subr.bf16.mxu0 %v1337
  %1371 = vmatpush1.bf16.msra.mxu0 %v1336
  %1372 = vmatprep.subr.bf16.mxu0 %v1335
  %1373 = vmatpush1.bf16.msra.mxu0 %v1334
  %1374 = vmatprep.subr.bf16.mxu0 %v1333
  %1375 = vmatpush1.bf16.msra.mxu0 %v1332
  %1376 = vmatprep.subr.bf16.mxu0 %v1331
  %1377 = vmatpush1.bf16.msra.mxu0 %v1330
  %1378 = vmatprep.subr.bf16.mxu0 %v1329
  %1379 = vmatpush1.bf16.msra.mxu0 %v1328
  %1380 = vmatprep.subr.bf16.mxu0 %v1327
  %1381 = vmatpush1.bf16.msra.mxu0 %v1326
  %1382 = vmatprep.subr.bf16.mxu0 %v1325
  %1383 = vmatpush1.bf16.msra.mxu0 %v1324
  %1384 = vmatprep.subr.bf16.mxu0 %v1323
  %1385 = vmatpush1.bf16.msra.mxu0 %v1322
  %1386 = vmatprep.subr.bf16.mxu0 0
  %1387 = vmatpush2.bf16.msra.mxu0 0
  %1388 = vmatprep.subr.bf16.mxu0 0
  %1389 = vmatpush2.bf16.msra.mxu0 0
  %1390 = vmatprep.subr.bf16.mxu0 0
  %1391 = vmatpush2.bf16.msra.mxu0 0
  %1392 = vmatprep.subr.bf16.mxu0 0
  %1393 = vmatpush2.bf16.msra.mxu0 0
  %1394 = vmatprep.subr.bf16.mxu0 %v1345
  %1395 = vmatpush2.bf16.msra.mxu0 %v1344
  %1396 = vmatprep.subr.bf16.mxu0 %v1343
  %1397 = vmatpush2.bf16.msra.mxu0 %v1342
  %1398 = vmatprep.subr.bf16.mxu0 %v1341
  %1399 = vmatpush2.bf16.msra.mxu0 %v1340
  %1400 = vmatprep.subr.bf16.mxu0 %v1339
  %1401 = vmatpush2.bf16.msra.mxu0 %v1338
  %1402 = vmatprep.mubr.bf16.mxu0 %v255
  %1403 = vmatmul.mubr.bf16.gmra.mxu0 %v115
  %v1404 = vpop.f32.mrf.mxu0
  %v1405 = vadd.f32 %v72, %v1404
  %v1406 = vpop.f32.mrf.mxu0
  %v1407 = vadd.f32 %v76, %v1406
  %v1408 = vpop.f32.mrf.mxu0
  %v1409 = vadd.f32 %v72, %v1408
  %v1410 = vpop.f32.mrf.mxu0
  %v1411 = vadd.f32 %v76, %v1410
  %1412 = vmatprep.mubr.bf16.mxu0 %v258
  %1413 = vmatmul.mubr.bf16.gmra.mxu0 %v117
  %v1414 = vpop.f32.mrf.mxu0
  %v1415 = vadd.f32 %v72, %v1414
  %v1416 = vpop.f32.mrf.mxu0
  %v1417 = vadd.f32 %v76, %v1416
  %v1418 = vpop.f32.mrf.mxu0
  %v1419 = vadd.f32 %v72, %v1418
  %v1420 = vpop.f32.mrf.mxu0
  %v1421 = vadd.f32 %v76, %v1420
  %1422 = vmatprep.mubr.bf16.mxu0 %v261
  %1423 = vmatmul.mubr.bf16.gmra.mxu0 %v119
  %v1424 = vpop.f32.mrf.mxu0
  %v1425 = vadd.f32 %v72, %v1424
  %v1426 = vpop.f32.mrf.mxu0
  %v1427 = vadd.f32 %v76, %v1426
  %v1428 = vpop.f32.mrf.mxu0
  %v1429 = vadd.f32 %v72, %v1428
  %v1430 = vpop.f32.mrf.mxu0
  %v1431 = vadd.f32 %v76, %v1430
  %1432 = vmatprep.mubr.bf16.mxu0 %v264
  %1433 = vmatmul.mubr.bf16.gmra.mxu0 %v121
  %v1434 = vpop.f32.mrf.mxu0
  %v1435 = vadd.f32 %v72, %v1434
  %v1436 = vpop.f32.mrf.mxu0
  %v1437 = vadd.f32 %v76, %v1436
  %v1438 = vpop.f32.mrf.mxu0
  %v1439 = vadd.f32 %v72, %v1438
  %v1440 = vpop.f32.mrf.mxu0
  %v1441 = vadd.f32 %v76, %v1440
  %1442 = vmatprep.mubr.bf16.mxu0 %v267
  %1443 = vmatmul.mubr.bf16.gmra.mxu0 %v123
  %v1444 = vpop.f32.mrf.mxu0
  %v1445 = vadd.f32 %v72, %v1444
  %v1446 = vpop.f32.mrf.mxu0
  %v1447 = vadd.f32 %v76, %v1446
  %v1448 = vpop.f32.mrf.mxu0
  %v1449 = vadd.f32 %v72, %v1448
  %v1450 = vpop.f32.mrf.mxu0
  %v1451 = vadd.f32 %v76, %v1450
  %1452 = vmatprep.mubr.bf16.mxu0 %v270
  %1453 = vmatmul.mubr.bf16.gmra.mxu0 %v125
  %v1454 = vpop.f32.mrf.mxu0
  %v1455 = vadd.f32 %v72, %v1454
  %v1456 = vpop.f32.mrf.mxu0
  %v1457 = vadd.f32 %v76, %v1456
  %v1458 = vpop.f32.mrf.mxu0
  %v1459 = vadd.f32 %v72, %v1458
  %v1460 = vpop.f32.mrf.mxu0
  %v1461 = vadd.f32 %v76, %v1460
  %1462 = vdwg.mxu0
  %v1463 = vpack.c.bf16 %v1409, %v1405
  %v1464 = vpack.c.bf16 %v1411, %v1407
  %v1465 = vpack.c.bf16 %v1419, %v1415
  %v1466 = vpack.c.bf16 %v1421, %v1417
  %v1467 = vpack.c.bf16 %v1429, %v1425
  %v1468 = vpack.c.bf16 %v1431, %v1427
  %v1469 = vpack.c.bf16 %v1439, %v1435
  %v1470 = vpack.c.bf16 %v1441, %v1437
  %v1471 = vpack.c.bf16 %v1449, %v1445
  %v1472 = vpack.c.bf16 %v1451, %v1447
  %v1473 = vpack.c.bf16 %v1459, %v1455
  %v1474 = vpack.c.bf16 %v1461, %v1457
  %v1475 = vmul.bf16 %v1463, 1056980736
  %v1476 = vmul.bf16 %v1464, 1056980736
  %v1477 = vmul.bf16 %v1465, 1056980736
  %v1478 = vmul.bf16 %v1466, 1056980736
  %v1479 = vmul.bf16 %v1467, 1056980736
  %v1480 = vmul.bf16 %v1468, 1056980736
  %v1481 = vmul.bf16 %v1469, 1056980736
  %v1482 = vmul.bf16 %v1470, 1056980736
  %v1483 = vmul.bf16 %v1471, 1056980736
  %v1484 = vmul.bf16 %v1472, 1056980736
  %v1485 = vmul.bf16 %v1473, 1056980736
  %v1486 = vmul.bf16 %v1474, 1056980736
  %v1487 = vmul.bf16 %v1463, 1027030327
  %v1488 = vmul.bf16 %v1464, 1027030327
  %v1489 = vmul.bf16 %v1465, 1027030327
  %v1490 = vmul.bf16 %v1466, 1027030327
  %v1491 = vmul.bf16 %v1467, 1027030327
  %v1492 = vmul.bf16 %v1468, 1027030327
  %v1493 = vmul.bf16 %v1469, 1027030327
  %v1494 = vmul.bf16 %v1470, 1027030327
  %v1495 = vmul.bf16 %v1471, 1027030327
  %v1496 = vmul.bf16 %v1472, 1027030327
  %v1497 = vmul.bf16 %v1473, 1027030327
  %v1498 = vmul.bf16 %v1474, 1027030327
  %v1499 = vmul.bf16 %v1487, %v1463
  %v1500 = vmul.bf16 %v1488, %v1464
  %v1501 = vmul.bf16 %v1489, %v1465
  %v1502 = vmul.bf16 %v1490, %v1466
  %v1503 = vmul.bf16 %v1491, %v1467
  %v1504 = vmul.bf16 %v1492, %v1468
  %v1505 = vmul.bf16 %v1493, %v1469
  %v1506 = vmul.bf16 %v1494, %v1470
  %v1507 = vmul.bf16 %v1495, %v1471
  %v1508 = vmul.bf16 %v1496, %v1472
  %v1509 = vmul.bf16 %v1497, %v1473
  %v1510 = vmul.bf16 %v1498, %v1474
  %v1511 = vmul.bf16 %v1499, %v1463
  %v1512 = vmul.bf16 %v1500, %v1464
  %v1513 = vmul.bf16 %v1501, %v1465
  %v1514 = vmul.bf16 %v1502, %v1466
  %v1515 = vmul.bf16 %v1503, %v1467
  %v1516 = vmul.bf16 %v1504, %v1468
  %v1517 = vmul.bf16 %v1505, %v1469
  %v1518 = vmul.bf16 %v1506, %v1470
  %v1519 = vmul.bf16 %v1507, %v1471
  %v1520 = vmul.bf16 %v1508, %v1472
  %v1521 = vmul.bf16 %v1509, %v1473
  %v1522 = vmul.bf16 %v1510, %v1474
  %v1523 = vadd.bf16 %v1463, %v1511
  %v1524 = vadd.bf16 %v1464, %v1512
  %v1525 = vadd.bf16 %v1465, %v1513
  %v1526 = vadd.bf16 %v1466, %v1514
  %v1527 = vadd.bf16 %v1467, %v1515
  %v1528 = vadd.bf16 %v1468, %v1516
  %v1529 = vadd.bf16 %v1469, %v1517
  %v1530 = vadd.bf16 %v1470, %v1518
  %v1531 = vadd.bf16 %v1471, %v1519
  %v1532 = vadd.bf16 %v1472, %v1520
  %v1533 = vadd.bf16 %v1473, %v1521
  %v1534 = vadd.bf16 %v1474, %v1522
  %v1535 = vmul.bf16 %v1523, 1061961548
  %v1536 = vmul.bf16 %v1524, 1061961548
  %v1537 = vmul.bf16 %v1525, 1061961548
  %v1538 = vmul.bf16 %v1526, 1061961548
  %v1539 = vmul.bf16 %v1527, 1061961548
  %v1540 = vmul.bf16 %v1528, 1061961548
  %v1541 = vmul.bf16 %v1529, 1061961548
  %v1542 = vmul.bf16 %v1530, 1061961548
  %v1543 = vmul.bf16 %v1531, 1061961548
  %v1544 = vmul.bf16 %v1532, 1061961548
  %v1545 = vmul.bf16 %v1533, 1061961548
  %v1546 = vmul.bf16 %v1534, 1061961548
  %v1547 = vtanh.bf16.pop %v1535
  %v1548 = vtanh.bf16.pop %v1536
  %v1549 = vtanh.bf16.pop %v1537
  %v1550 = vtanh.bf16.pop %v1538
  %v1551 = vtanh.bf16.pop %v1539
  %v1552 = vtanh.bf16.pop %v1540
  %v1553 = vtanh.bf16.pop %v1541
  %v1554 = vtanh.bf16.pop %v1542
  %v1555 = vtanh.bf16.pop %v1543
  %v1556 = vtanh.bf16.pop %v1544
  %v1557 = vtanh.bf16.pop %v1545
  %v1558 = vtanh.bf16.pop %v1546
  %v1559 = vadd.bf16 %v1547, 1065369472
  %v1560 = vadd.bf16 %v1548, 1065369472
  %v1561 = vadd.bf16 %v1549, 1065369472
  %v1562 = vadd.bf16 %v1550, 1065369472
  %v1563 = vadd.bf16 %v1551, 1065369472
  %v1564 = vadd.bf16 %v1552, 1065369472
  %v1565 = vadd.bf16 %v1553, 1065369472
  %v1566 = vadd.bf16 %v1554, 1065369472
  %v1567 = vadd.bf16 %v1555, 1065369472
  %v1568 = vadd.bf16 %v1556, 1065369472
  %v1569 = vadd.bf16 %v1557, 1065369472
  %v1570 = vadd.bf16 %v1558, 1065369472
  %v1571 = vmul.bf16 %v1475, %v1559
  %v1572 = vmul.bf16 %v1476, %v1560
  %v1573 = vmul.bf16 %v1477, %v1561
  %v1574 = vmul.bf16 %v1478, %v1562
  %v1575 = vmul.bf16 %v1479, %v1563
  %v1576 = vmul.bf16 %v1480, %v1564
  %v1577 = vmul.bf16 %v1481, %v1565
  %v1578 = vmul.bf16 %v1482, %v1566
  %v1579 = vmul.bf16 %v1483, %v1567
  %v1580 = vmul.bf16 %v1484, %v1568
  %v1581 = vmul.bf16 %v1485, %v1569
  %v1582 = vmul.bf16 %v1486, %v1570
  %v1583 = vmax.bf16 %v1213, %v1571
  %v1584 = vmax.bf16 %v1214, %v1572
  %v1585 = vmax.bf16 %v1215, %v1573
  %v1586 = vmax.bf16 %v1216, %v1574
  %v1587 = vmax.bf16 %v1217, %v1575
  %v1588 = vmax.bf16 %v1218, %v1576
  %v1589 = vmax.bf16 %v1219, %v1577
  %v1590 = vmax.bf16 %v1220, %v1578
  %v1591 = vmax.bf16 %v1221, %v1579
  %v1592 = vmax.bf16 %v1222, %v1580
  %v1593 = vmax.bf16 %v1223, %v1581
  %v1594 = vmax.bf16 %v1224, %v1582
  %v1595 = vld [vmem:[%s2] sm:$0xf]
  %v1596 = vld [vmem:[%s2 + $0x4] sm:$0xf]
  %v1597 = vld [vmem:[%s2 + $0x8] sm:$0xf]
  %v1598 = vld [vmem:[%s2 + $0xc] sm:$0xf]
  %v1599 = vld [vmem:[%s2 + $0x10] sm:$0xf]
  %v1600 = vld [vmem:[%s2 + $0x14] sm:$0xf]
  %v1601 = vld [vmem:[%s2 + $0x18] sm:$0xf]
  %v1602 = vld [vmem:[%s2 + $0x1c] sm:$0xf]
  %v1603 = vld [vmem:[%s2 + $0x20] sm:$0xf]
  %v1604 = vld [vmem:[%s2 + $0x24] sm:$0xf]
  %v1605 = vld [vmem:[%s2 + $0x28] sm:$0xf]
  %v1606 = vld [vmem:[%s2 + $0x2c] sm:$0xf]
  %v1607 = vld [vmem:[%s2 + $0x30] sm:$0xf]
  %v1608 = vld [vmem:[%s2 + $0x34] sm:$0xf]
  %v1609 = vld [vmem:[%s2 + $0x38] sm:$0xf]
  %v1610 = vld [vmem:[%s2 + $0x3c] sm:$0xf]
  %v1611 = vld [vmem:[%s2 + $0x40] sm:$0xf]
  %v1612 = vld [vmem:[%s2 + $0x44] sm:$0xf]
  %s1613 = scalar_lea.vmem %s2, 72
  %v1614 = vld [vmem:[%s1613] sm:$0xf]
  %v1615 = vld [vmem:[%s1613 + $0x4] sm:$0xf]
  %v1616 = vld [vmem:[%s1613 + $0x8] sm:$0xf]
  %v1617 = vld [vmem:[%s1613 + $0xc] sm:$0xf]
  %v1618 = vld [vmem:[%s1613 + $0x10] sm:$0xf]
  %v1619 = vld [vmem:[%s1613 + $0x14] sm:$0xf]
  %v1620 = vld [vmem:[%s1613 + $0x18] sm:$0xf]
  %v1621 = vld [vmem:[%s1613 + $0x1c] sm:$0xf]
  %v1622 = vld [vmem:[%s1613 + $0x20] sm:$0xf]
  %v1623 = vld [vmem:[%s1613 + $0x24] sm:$0xf]
  %v1624 = vld [vmem:[%s1613 + $0x28] sm:$0xf]
  %v1625 = vld [vmem:[%s1613 + $0x2c] sm:$0xf]
  %v1626 = vld [vmem:[%s1613 + $0x30] sm:$0xf]
  %v1627 = vld [vmem:[%s1613 + $0x34] sm:$0xf]
  %v1628 = vld [vmem:[%s1613 + $0x38] sm:$0xf]
  %v1629 = vld [vmem:[%s1613 + $0x3c] sm:$0xf]
  %v1630 = vld [vmem:[%s1613 + $0x40] sm:$0xf]
  %v1631 = vld [vmem:[%s1613 + $0x44] sm:$0xf]
  %v1650 = vunpack.c.l.b16 %v1614
  %v1651 = vunpack.c.l.b16 %v1615
  %v1652 = vunpack.c.l.b16 %v1616
  %v1653 = vunpack.c.l.b16 %v1617
  %v1654 = vunpack.c.l.b16 %v1618
  %v1655 = vunpack.c.l.b16 %v1619
  %v1656 = vunpack.c.l.b16 %v1620
  %v1657 = vunpack.c.l.b16 %v1621
  %v1658 = vunpack.c.l.b16 %v1622
  %v1659 = vunpack.c.l.b16 %v1623
  %v1660 = vunpack.c.l.b16 %v1624
  %v1661 = vunpack.c.l.b16 %v1625
  %v1662 = vunpack.c.l.b16 %v1626
  %v1663 = vunpack.c.l.b16 %v1627
  %v1664 = vunpack.c.l.b16 %v1628
  %v1665 = vunpack.c.l.b16 %v1629
  %v1666 = vunpack.c.l.b16 %v1630
  %v1667 = vunpack.c.l.b16 %v1631
  %v1668 = vpack.c.b16 %v1651, %v1650
  %v1669 = vpack.c.b16 %v1653, %v1652
  %v1670 = vpack.c.b16 %v1655, %v1654
  %v1671 = vpack.c.b16 %v1657, %v1656
  %v1672 = vpack.c.b16 %v1659, %v1658
  %v1673 = vpack.c.b16 %v1661, %v1660
  %v1674 = vpack.c.b16 %v1663, %v1662
  %v1675 = vpack.c.b16 %v1665, %v1664
  %v1676 = vpack.c.b16 %v1667, %v1666
  %vm1686 = vcmask 130048
  %v1688 = vsel %vm1686, %v1586, 0
  %1690 = vmatprep.subr.bf16.mxu0 0
  %1691 = vmatpush1.bf16.msra.mxu0 %v1675
  %1692 = vmatprep.subr.bf16.mxu0 0
  %1693 = vmatpush1.bf16.msra.mxu0 %v1674
  %1694 = vmatprep.subr.bf16.mxu0 0
  %1695 = vmatpush1.bf16.msra.mxu0 %v1673
  %1696 = vmatprep.subr.bf16.mxu0 0
  %1697 = vmatpush1.bf16.msra.mxu0 %v1672
  %1698 = vmatprep.subr.bf16.mxu0 0
  %1699 = vmatpush1.bf16.msra.mxu0 %v1671
  %1700 = vmatprep.subr.bf16.mxu0 0
  %1701 = vmatpush1.bf16.msra.mxu0 %v1670
  %1702 = vmatprep.subr.bf16.mxu0 0
  %1703 = vmatpush1.bf16.msra.mxu0 %v1669
  %1704 = vmatprep.subr.bf16.mxu0 0
  %1705 = vmatpush1.bf16.msra.mxu0 %v1668
  %1706 = vmatprep.subr.bf16.mxu0 0
  %1707 = vmatpush2.bf16.msra.mxu0 0
  %1708 = vmatprep.subr.bf16.mxu0 0
  %1709 = vmatpush2.bf16.msra.mxu0 0
  %1710 = vmatprep.subr.bf16.mxu0 0
  %1711 = vmatpush2.bf16.msra.mxu0 0
  %1712 = vmatprep.subr.bf16.mxu0 0
  %1713 = vmatpush2.bf16.msra.mxu0 0
  %1714 = vmatprep.subr.bf16.mxu0 0
  %1715 = vmatpush2.bf16.msra.mxu0 0
  %1716 = vmatprep.subr.bf16.mxu0 0
  %1717 = vmatpush2.bf16.msra.mxu0 0
  %1718 = vmatprep.subr.bf16.mxu0 0
  %1719 = vmatpush2.bf16.msra.mxu0 0
  %1720 = vmatprep.subr.bf16.mxu0 0
  %1721 = vmatpush2.bf16.msra.mxu0 %v1676
  %1722 = vmatprep.mubr.bf16.mxu0 %v1688
  %1723 = vmatmul.mubr.bf16.gmra.mxu0 %v1585
  %v1724 = vpop.f32.mrf.mxu0
  %v1725 = vadd.f32 0.0, %v1724
  %v1726 = vpop.f32.mrf.mxu0
  %v1727 = vpop.f32.mrf.mxu0
  %v1728 = vadd.f32 0.0, %v1727
  %v1729 = vpop.f32.mrf.mxu0
  %1730 = vdwg.mxu0
  %v1749 = vunpack.c.l.b16 %v1595
  %v1750 = vunpack.c.l.b16 %v1596
  %v1751 = vunpack.c.l.b16 %v1597
  %v1752 = vunpack.c.l.b16 %v1598
  %v1753 = vunpack.c.l.b16 %v1599
  %v1754 = vunpack.c.l.b16 %v1600
  %v1755 = vunpack.c.l.b16 %v1601
  %v1756 = vunpack.c.l.b16 %v1602
  %v1757 = vunpack.c.l.b16 %v1603
  %v1758 = vunpack.c.l.b16 %v1604
  %v1759 = vunpack.c.l.b16 %v1605
  %v1760 = vunpack.c.l.b16 %v1606
  %v1761 = vunpack.c.l.b16 %v1607
  %v1762 = vunpack.c.l.b16 %v1608
  %v1763 = vunpack.c.l.b16 %v1609
  %v1764 = vunpack.c.l.b16 %v1610
  %v1765 = vunpack.c.l.b16 %v1611
  %v1766 = vunpack.c.l.b16 %v1612
  %v1767 = vpack.c.b16 %v1750, %v1749
  %v1768 = vpack.c.b16 %v1752, %v1751
  %v1769 = vpack.c.b16 %v1754, %v1753
  %v1770 = vpack.c.b16 %v1756, %v1755
  %v1771 = vpack.c.b16 %v1758, %v1757
  %v1772 = vpack.c.b16 %v1760, %v1759
  %v1773 = vpack.c.b16 %v1762, %v1761
  %v1774 = vpack.c.b16 %v1764, %v1763
  %v1775 = vpack.c.b16 %v1766, %v1765
  %v1786 = vsel %vm1686, %v1584, 0
  %1788 = vmatprep.subr.bf16.mxu0 0
  %1789 = vmatpush1.bf16.msra.mxu0 %v1774
  %1790 = vmatprep.subr.bf16.mxu0 0
  %1791 = vmatpush1.bf16.msra.mxu0 %v1773
  %1792 = vmatprep.subr.bf16.mxu0 0
  %1793 = vmatpush1.bf16.msra.mxu0 %v1772
  %1794 = vmatprep.subr.bf16.mxu0 0
  %1795 = vmatpush1.bf16.msra.mxu0 %v1771
  %1796 = vmatprep.subr.bf16.mxu0 0
  %1797 = vmatpush1.bf16.msra.mxu0 %v1770
  %1798 = vmatprep.subr.bf16.mxu0 0
  %1799 = vmatpush1.bf16.msra.mxu0 %v1769
  %1800 = vmatprep.subr.bf16.mxu0 0
  %1801 = vmatpush1.bf16.msra.mxu0 %v1768
  %1802 = vmatprep.subr.bf16.mxu0 0
  %1803 = vmatpush1.bf16.msra.mxu0 %v1767
  %1804 = vmatprep.subr.bf16.mxu0 0
  %1805 = vmatpush2.bf16.msra.mxu0 0
  %1806 = vmatprep.subr.bf16.mxu0 0
  %1807 = vmatpush2.bf16.msra.mxu0 0
  %1808 = vmatprep.subr.bf16.mxu0 0
  %1809 = vmatpush2.bf16.msra.mxu0 0
  %1810 = vmatprep.subr.bf16.mxu0 0
  %1811 = vmatpush2.bf16.msra.mxu0 0
  %1812 = vmatprep.subr.bf16.mxu0 0
  %1813 = vmatpush2.bf16.msra.mxu0 0
  %1814 = vmatprep.subr.bf16.mxu0 0
  %1815 = vmatpush2.bf16.msra.mxu0 0
  %1816 = vmatprep.subr.bf16.mxu0 0
  %1817 = vmatpush2.bf16.msra.mxu0 0
  %1818 = vmatprep.subr.bf16.mxu0 0
  %1819 = vmatpush2.bf16.msra.mxu0 %v1775
  %1820 = vmatprep.mubr.bf16.mxu0 %v1786
  %1821 = vmatmul.mubr.bf16.gmra.mxu0 %v1583
  %v1822 = vpop.f32.mrf.mxu0
  %v1823 = vadd.f32 %v1725, %v1822
  %v1824 = vpop.f32.mrf.mxu0
  %v1825 = vpop.f32.mrf.mxu0
  %v1826 = vadd.f32 %v1728, %v1825
  %v1827 = vpop.f32.mrf.mxu0
  %1828 = vdwg.mxu0
  %s1829 = scalar_lea.vmem %s2, 144
  %v1830 = vld [vmem:[%s1829] sm:$0xf]
  %v1831 = vld [vmem:[%s1829 + $0x4] sm:$0xf]
  %v1832 = vld [vmem:[%s1829 + $0x8] sm:$0xf]
  %v1833 = vld [vmem:[%s1829 + $0xc] sm:$0xf]
  %v1834 = vld [vmem:[%s1829 + $0x10] sm:$0xf]
  %v1835 = vld [vmem:[%s1829 + $0x14] sm:$0xf]
  %v1836 = vld [vmem:[%s1829 + $0x18] sm:$0xf]
  %v1837 = vld [vmem:[%s1829 + $0x1c] sm:$0xf]
  %v1838 = vld [vmem:[%s1829 + $0x20] sm:$0xf]
  %v1839 = vld [vmem:[%s1829 + $0x24] sm:$0xf]
  %v1840 = vld [vmem:[%s1829 + $0x28] sm:$0xf]
  %v1841 = vld [vmem:[%s1829 + $0x2c] sm:$0xf]
  %v1842 = vld [vmem:[%s1829 + $0x30] sm:$0xf]
  %v1843 = vld [vmem:[%s1829 + $0x34] sm:$0xf]
  %v1844 = vld [vmem:[%s1829 + $0x38] sm:$0xf]
  %v1845 = vld [vmem:[%s1829 + $0x3c] sm:$0xf]
  %v1846 = vld [vmem:[%s1829 + $0x40] sm:$0xf]
  %v1847 = vld [vmem:[%s1829 + $0x44] sm:$0xf]
  %v1866 = vunpack.c.l.b16 %v1830
  %v1867 = vunpack.c.l.b16 %v1831
  %v1868 = vunpack.c.l.b16 %v1832
  %v1869 = vunpack.c.l.b16 %v1833
  %v1870 = vunpack.c.l.b16 %v1834
  %v1871 = vunpack.c.l.b16 %v1835
  %v1872 = vunpack.c.l.b16 %v1836
  %v1873 = vunpack.c.l.b16 %v1837
  %v1874 = vunpack.c.l.b16 %v1838
  %v1875 = vunpack.c.l.b16 %v1839
  %v1876 = vunpack.c.l.b16 %v1840
  %v1877 = vunpack.c.l.b16 %v1841
  %v1878 = vunpack.c.l.b16 %v1842
  %v1879 = vunpack.c.l.b16 %v1843
  %v1880 = vunpack.c.l.b16 %v1844
  %v1881 = vunpack.c.l.b16 %v1845
  %v1882 = vunpack.c.l.b16 %v1846
  %v1883 = vunpack.c.l.b16 %v1847
  %v1884 = vpack.c.b16 %v1867, %v1866
  %v1885 = vpack.c.b16 %v1869, %v1868
  %v1886 = vpack.c.b16 %v1871, %v1870
  %v1887 = vpack.c.b16 %v1873, %v1872
  %v1888 = vpack.c.b16 %v1875, %v1874
  %v1889 = vpack.c.b16 %v1877, %v1876
  %v1890 = vpack.c.b16 %v1879, %v1878
  %v1891 = vpack.c.b16 %v1881, %v1880
  %v1892 = vpack.c.b16 %v1883, %v1882
  %v1903 = vsel %vm1686, %v1588, 0
  %1905 = vmatprep.subr.bf16.mxu0 0
  %1906 = vmatpush1.bf16.msra.mxu0 %v1891
  %1907 = vmatprep.subr.bf16.mxu0 0
  %1908 = vmatpush1.bf16.msra.mxu0 %v1890
  %1909 = vmatprep.subr.bf16.mxu0 0
  %1910 = vmatpush1.bf16.msra.mxu0 %v1889
  %1911 = vmatprep.subr.bf16.mxu0 0
  %1912 = vmatpush1.bf16.msra.mxu0 %v1888
  %1913 = vmatprep.subr.bf16.mxu0 0
  %1914 = vmatpush1.bf16.msra.mxu0 %v1887
  %1915 = vmatprep.subr.bf16.mxu0 0
  %1916 = vmatpush1.bf16.msra.mxu0 %v1886
  %1917 = vmatprep.subr.bf16.mxu0 0
  %1918 = vmatpush1.bf16.msra.mxu0 %v1885
  %1919 = vmatprep.subr.bf16.mxu0 0
  %1920 = vmatpush1.bf16.msra.mxu0 %v1884
  %1921 = vmatprep.subr.bf16.mxu0 0
  %1922 = vmatpush2.bf16.msra.mxu0 0
  %1923 = vmatprep.subr.bf16.mxu0 0
  %1924 = vmatpush2.bf16.msra.mxu0 0
  %1925 = vmatprep.subr.bf16.mxu0 0
  %1926 = vmatpush2.bf16.msra.mxu0 0
  %1927 = vmatprep.subr.bf16.mxu0 0
  %1928 = vmatpush2.bf16.msra.mxu0 0
  %1929 = vmatprep.subr.bf16.mxu0 0
  %1930 = vmatpush2.bf16.msra.mxu0 0
  %1931 = vmatprep.subr.bf16.mxu0 0
  %1932 = vmatpush2.bf16.msra.mxu0 0
  %1933 = vmatprep.subr.bf16.mxu0 0
  %1934 = vmatpush2.bf16.msra.mxu0 0
  %1935 = vmatprep.subr.bf16.mxu0 0
  %1936 = vmatpush2.bf16.msra.mxu0 %v1892
  %1937 = vmatprep.mubr.bf16.mxu0 %v1903
  %1938 = vmatmul.mubr.bf16.gmra.mxu0 %v1587
  %v1939 = vpop.f32.mrf.mxu0
  %v1940 = vadd.f32 0.0, %v1939
  %v1941 = vpop.f32.mrf.mxu0
  %v1942 = vpop.f32.mrf.mxu0
  %v1943 = vadd.f32 0.0, %v1942
  %v1944 = vpop.f32.mrf.mxu0
  %1945 = vdwg.mxu0
  %v1946 = vadd.f32 %v1823, %v1940
  %v1947 = vadd.f32 %v1826, %v1943
  %s1948 = scalar_lea.vmem %s2, 216
  %v1949 = vld [vmem:[%s1948] sm:$0xf]
  %v1950 = vld [vmem:[%s1948 + $0x4] sm:$0xf]
  %v1951 = vld [vmem:[%s1948 + $0x8] sm:$0xf]
  %v1952 = vld [vmem:[%s1948 + $0xc] sm:$0xf]
  %v1953 = vld [vmem:[%s1948 + $0x10] sm:$0xf]
  %v1954 = vld [vmem:[%s1948 + $0x14] sm:$0xf]
  %v1955 = vld [vmem:[%s1948 + $0x18] sm:$0xf]
  %v1956 = vld [vmem:[%s1948 + $0x1c] sm:$0xf]
  %v1957 = vld [vmem:[%s1948 + $0x20] sm:$0xf]
  %v1958 = vld [vmem:[%s1948 + $0x24] sm:$0xf]
  %v1959 = vld [vmem:[%s1948 + $0x28] sm:$0xf]
  %v1960 = vld [vmem:[%s1948 + $0x2c] sm:$0xf]
  %v1961 = vld [vmem:[%s1948 + $0x30] sm:$0xf]
  %v1962 = vld [vmem:[%s1948 + $0x34] sm:$0xf]
  %v1963 = vld [vmem:[%s1948 + $0x38] sm:$0xf]
  %v1964 = vld [vmem:[%s1948 + $0x3c] sm:$0xf]
  %v1965 = vld [vmem:[%s1948 + $0x40] sm:$0xf]
  %v1966 = vld [vmem:[%s1948 + $0x44] sm:$0xf]
  %v1985 = vunpack.c.l.b16 %v1949
  %v1986 = vunpack.c.l.b16 %v1950
  %v1987 = vunpack.c.l.b16 %v1951
  %v1988 = vunpack.c.l.b16 %v1952
  %v1989 = vunpack.c.l.b16 %v1953
  %v1990 = vunpack.c.l.b16 %v1954
  %v1991 = vunpack.c.l.b16 %v1955
  %v1992 = vunpack.c.l.b16 %v1956
  %v1993 = vunpack.c.l.b16 %v1957
  %v1994 = vunpack.c.l.b16 %v1958
  %v1995 = vunpack.c.l.b16 %v1959
  %v1996 = vunpack.c.l.b16 %v1960
  %v1997 = vunpack.c.l.b16 %v1961
  %v1998 = vunpack.c.l.b16 %v1962
  %v1999 = vunpack.c.l.b16 %v1963
  %v2000 = vunpack.c.l.b16 %v1964
  %v2001 = vunpack.c.l.b16 %v1965
  %v2002 = vunpack.c.l.b16 %v1966
  %v2003 = vpack.c.b16 %v1986, %v1985
  %v2004 = vpack.c.b16 %v1988, %v1987
  %v2005 = vpack.c.b16 %v1990, %v1989
  %v2006 = vpack.c.b16 %v1992, %v1991
  %v2007 = vpack.c.b16 %v1994, %v1993
  %v2008 = vpack.c.b16 %v1996, %v1995
  %v2009 = vpack.c.b16 %v1998, %v1997
  %v2010 = vpack.c.b16 %v2000, %v1999
  %v2011 = vpack.c.b16 %v2002, %v2001
  %v2022 = vsel %vm1686, %v1590, 0
  %2024 = vmatprep.subr.bf16.mxu0 0
  %2025 = vmatpush1.bf16.msra.mxu0 %v2010
  %2026 = vmatprep.subr.bf16.mxu0 0
  %2027 = vmatpush1.bf16.msra.mxu0 %v2009
  %2028 = vmatprep.subr.bf16.mxu0 0
  %2029 = vmatpush1.bf16.msra.mxu0 %v2008
  %2030 = vmatprep.subr.bf16.mxu0 0
  %2031 = vmatpush1.bf16.msra.mxu0 %v2007
  %2032 = vmatprep.subr.bf16.mxu0 0
  %2033 = vmatpush1.bf16.msra.mxu0 %v2006
  %2034 = vmatprep.subr.bf16.mxu0 0
  %2035 = vmatpush1.bf16.msra.mxu0 %v2005
  %2036 = vmatprep.subr.bf16.mxu0 0
  %2037 = vmatpush1.bf16.msra.mxu0 %v2004
  %2038 = vmatprep.subr.bf16.mxu0 0
  %2039 = vmatpush1.bf16.msra.mxu0 %v2003
  %2040 = vmatprep.subr.bf16.mxu0 0
  %2041 = vmatpush2.bf16.msra.mxu0 0
  %2042 = vmatprep.subr.bf16.mxu0 0
  %2043 = vmatpush2.bf16.msra.mxu0 0
  %2044 = vmatprep.subr.bf16.mxu0 0
  %2045 = vmatpush2.bf16.msra.mxu0 0
  %2046 = vmatprep.subr.bf16.mxu0 0
  %2047 = vmatpush2.bf16.msra.mxu0 0
  %2048 = vmatprep.subr.bf16.mxu0 0
  %2049 = vmatpush2.bf16.msra.mxu0 0
  %2050 = vmatprep.subr.bf16.mxu0 0
  %2051 = vmatpush2.bf16.msra.mxu0 0
  %2052 = vmatprep.subr.bf16.mxu0 0
  %2053 = vmatpush2.bf16.msra.mxu0 0
  %2054 = vmatprep.subr.bf16.mxu0 0
  %2055 = vmatpush2.bf16.msra.mxu0 %v2011
  %2056 = vmatprep.mubr.bf16.mxu0 %v2022
  %2057 = vmatmul.mubr.bf16.gmra.mxu0 %v1589
  %v2058 = vpop.f32.mrf.mxu0
  %v2059 = vadd.f32 0.0, %v2058
  %v2060 = vpop.f32.mrf.mxu0
  %v2061 = vpop.f32.mrf.mxu0
  %v2062 = vadd.f32 0.0, %v2061
  %v2063 = vpop.f32.mrf.mxu0
  %2064 = vdwg.mxu0
  %v2065 = vadd.f32 %v1946, %v2059
  %v2066 = vadd.f32 %v1947, %v2062
  %s2067 = scalar_lea.vmem %s2, 288
  %v2068 = vld [vmem:[%s2067] sm:$0xf]
  %v2069 = vld [vmem:[%s2067 + $0x4] sm:$0xf]
  %v2070 = vld [vmem:[%s2067 + $0x8] sm:$0xf]
  %v2071 = vld [vmem:[%s2067 + $0xc] sm:$0xf]
  %v2072 = vld [vmem:[%s2067 + $0x10] sm:$0xf]
  %v2073 = vld [vmem:[%s2067 + $0x14] sm:$0xf]
  %v2074 = vld [vmem:[%s2067 + $0x18] sm:$0xf]
  %v2075 = vld [vmem:[%s2067 + $0x1c] sm:$0xf]
  %v2076 = vld [vmem:[%s2067 + $0x20] sm:$0xf]
  %v2077 = vld [vmem:[%s2067 + $0x24] sm:$0xf]
  %v2078 = vld [vmem:[%s2067 + $0x28] sm:$0xf]
  %v2079 = vld [vmem:[%s2067 + $0x2c] sm:$0xf]
  %v2080 = vld [vmem:[%s2067 + $0x30] sm:$0xf]
  %v2081 = vld [vmem:[%s2067 + $0x34] sm:$0xf]
  %v2082 = vld [vmem:[%s2067 + $0x38] sm:$0xf]
  %v2083 = vld [vmem:[%s2067 + $0x3c] sm:$0xf]
  %v2084 = vld [vmem:[%s2067 + $0x40] sm:$0xf]
  %v2085 = vld [vmem:[%s2067 + $0x44] sm:$0xf]
  %v2104 = vunpack.c.l.b16 %v2068
  %v2105 = vunpack.c.l.b16 %v2069
  %v2106 = vunpack.c.l.b16 %v2070
  %v2107 = vunpack.c.l.b16 %v2071
  %v2108 = vunpack.c.l.b16 %v2072
  %v2109 = vunpack.c.l.b16 %v2073
  %v2110 = vunpack.c.l.b16 %v2074
  %v2111 = vunpack.c.l.b16 %v2075
  %v2112 = vunpack.c.l.b16 %v2076
  %v2113 = vunpack.c.l.b16 %v2077
  %v2114 = vunpack.c.l.b16 %v2078
  %v2115 = vunpack.c.l.b16 %v2079
  %v2116 = vunpack.c.l.b16 %v2080
  %v2117 = vunpack.c.l.b16 %v2081
  %v2118 = vunpack.c.l.b16 %v2082
  %v2119 = vunpack.c.l.b16 %v2083
  %v2120 = vunpack.c.l.b16 %v2084
  %v2121 = vunpack.c.l.b16 %v2085
  %v2122 = vpack.c.b16 %v2105, %v2104
  %v2123 = vpack.c.b16 %v2107, %v2106
  %v2124 = vpack.c.b16 %v2109, %v2108
  %v2125 = vpack.c.b16 %v2111, %v2110
  %v2126 = vpack.c.b16 %v2113, %v2112
  %v2127 = vpack.c.b16 %v2115, %v2114
  %v2128 = vpack.c.b16 %v2117, %v2116
  %v2129 = vpack.c.b16 %v2119, %v2118
  %v2130 = vpack.c.b16 %v2121, %v2120
  %v2141 = vsel %vm1686, %v1592, 0
  %2143 = vmatprep.subr.bf16.mxu0 0
  %2144 = vmatpush1.bf16.msra.mxu0 %v2129
  %2145 = vmatprep.subr.bf16.mxu0 0
  %2146 = vmatpush1.bf16.msra.mxu0 %v2128
  %2147 = vmatprep.subr.bf16.mxu0 0
  %2148 = vmatpush1.bf16.msra.mxu0 %v2127
  %2149 = vmatprep.subr.bf16.mxu0 0
  %2150 = vmatpush1.bf16.msra.mxu0 %v2126
  %2151 = vmatprep.subr.bf16.mxu0 0
  %2152 = vmatpush1.bf16.msra.mxu0 %v2125
  %2153 = vmatprep.subr.bf16.mxu0 0
  %2154 = vmatpush1.bf16.msra.mxu0 %v2124
  %2155 = vmatprep.subr.bf16.mxu0 0
  %2156 = vmatpush1.bf16.msra.mxu0 %v2123
  %2157 = vmatprep.subr.bf16.mxu0 0
  %2158 = vmatpush1.bf16.msra.mxu0 %v2122
  %2159 = vmatprep.subr.bf16.mxu0 0
  %2160 = vmatpush2.bf16.msra.mxu0 0
  %2161 = vmatprep.subr.bf16.mxu0 0
  %2162 = vmatpush2.bf16.msra.mxu0 0
  %2163 = vmatprep.subr.bf16.mxu0 0
  %2164 = vmatpush2.bf16.msra.mxu0 0
  %2165 = vmatprep.subr.bf16.mxu0 0
  %2166 = vmatpush2.bf16.msra.mxu0 0
  %2167 = vmatprep.subr.bf16.mxu0 0
  %2168 = vmatpush2.bf16.msra.mxu0 0
  %2169 = vmatprep.subr.bf16.mxu0 0
  %2170 = vmatpush2.bf16.msra.mxu0 0
  %2171 = vmatprep.subr.bf16.mxu0 0
  %2172 = vmatpush2.bf16.msra.mxu0 0
  %2173 = vmatprep.subr.bf16.mxu0 0
  %2174 = vmatpush2.bf16.msra.mxu0 %v2130
  %2175 = vmatprep.mubr.bf16.mxu0 %v2141
  %2176 = vmatmul.mubr.bf16.gmra.mxu0 %v1591
  %v2177 = vpop.f32.mrf.mxu0
  %v2178 = vadd.f32 0.0, %v2177
  %v2179 = vpop.f32.mrf.mxu0
  %v2180 = vpop.f32.mrf.mxu0
  %v2181 = vadd.f32 0.0, %v2180
  %v2182 = vpop.f32.mrf.mxu0
  %2183 = vdwg.mxu0
  %v2184 = vadd.f32 %v2065, %v2178
  %v2185 = vadd.f32 %v2066, %v2181
  %s2186 = scalar_lea.vmem %s2, 360
  %v2187 = vld [vmem:[%s2186] sm:$0xf]
  %v2188 = vld [vmem:[%s2186 + $0x4] sm:$0xf]
  %v2189 = vld [vmem:[%s2186 + $0x8] sm:$0xf]
  %v2190 = vld [vmem:[%s2186 + $0xc] sm:$0xf]
  %v2191 = vld [vmem:[%s2186 + $0x10] sm:$0xf]
  %v2192 = vld [vmem:[%s2186 + $0x14] sm:$0xf]
  %v2193 = vld [vmem:[%s2186 + $0x18] sm:$0xf]
  %v2194 = vld [vmem:[%s2186 + $0x1c] sm:$0xf]
  %v2195 = vld [vmem:[%s2186 + $0x20] sm:$0xf]
  %v2196 = vld [vmem:[%s2186 + $0x24] sm:$0xf]
  %v2197 = vld [vmem:[%s2186 + $0x28] sm:$0xf]
  %v2198 = vld [vmem:[%s2186 + $0x2c] sm:$0xf]
  %v2199 = vld [vmem:[%s2186 + $0x30] sm:$0xf]
  %v2200 = vld [vmem:[%s2186 + $0x34] sm:$0xf]
  %v2201 = vld [vmem:[%s2186 + $0x38] sm:$0xf]
  %v2202 = vld [vmem:[%s2186 + $0x3c] sm:$0xf]
  %v2203 = vld [vmem:[%s2186 + $0x40] sm:$0xf]
  %v2204 = vld [vmem:[%s2186 + $0x44] sm:$0xf]
  %v2223 = vunpack.c.l.b16 %v2187
  %v2224 = vunpack.c.l.b16 %v2188
  %v2225 = vunpack.c.l.b16 %v2189
  %v2226 = vunpack.c.l.b16 %v2190
  %v2227 = vunpack.c.l.b16 %v2191
  %v2228 = vunpack.c.l.b16 %v2192
  %v2229 = vunpack.c.l.b16 %v2193
  %v2230 = vunpack.c.l.b16 %v2194
  %v2231 = vunpack.c.l.b16 %v2195
  %v2232 = vunpack.c.l.b16 %v2196
  %v2233 = vunpack.c.l.b16 %v2197
  %v2234 = vunpack.c.l.b16 %v2198
  %v2235 = vunpack.c.l.b16 %v2199
  %v2236 = vunpack.c.l.b16 %v2200
  %v2237 = vunpack.c.l.b16 %v2201
  %v2238 = vunpack.c.l.b16 %v2202
  %v2239 = vunpack.c.l.b16 %v2203
  %v2240 = vunpack.c.l.b16 %v2204
  %v2241 = vpack.c.b16 %v2224, %v2223
  %v2242 = vpack.c.b16 %v2226, %v2225
  %v2243 = vpack.c.b16 %v2228, %v2227
  %v2244 = vpack.c.b16 %v2230, %v2229
  %v2245 = vpack.c.b16 %v2232, %v2231
  %v2246 = vpack.c.b16 %v2234, %v2233
  %v2247 = vpack.c.b16 %v2236, %v2235
  %v2248 = vpack.c.b16 %v2238, %v2237
  %v2249 = vpack.c.b16 %v2240, %v2239
  %v2260 = vsel %vm1686, %v1594, 0
  %2262 = vmatprep.subr.bf16.mxu0 0
  %2263 = vmatpush1.bf16.msra.mxu0 %v2248
  %2264 = vmatprep.subr.bf16.mxu0 0
  %2265 = vmatpush1.bf16.msra.mxu0 %v2247
  %2266 = vmatprep.subr.bf16.mxu0 0
  %2267 = vmatpush1.bf16.msra.mxu0 %v2246
  %2268 = vmatprep.subr.bf16.mxu0 0
  %2269 = vmatpush1.bf16.msra.mxu0 %v2245
  %2270 = vmatprep.subr.bf16.mxu0 0
  %2271 = vmatpush1.bf16.msra.mxu0 %v2244
  %2272 = vmatprep.subr.bf16.mxu0 0
  %2273 = vmatpush1.bf16.msra.mxu0 %v2243
  %2274 = vmatprep.subr.bf16.mxu0 0
  %2275 = vmatpush1.bf16.msra.mxu0 %v2242
  %2276 = vmatprep.subr.bf16.mxu0 0
  %2277 = vmatpush1.bf16.msra.mxu0 %v2241
  %2278 = vmatprep.subr.bf16.mxu0 0
  %2279 = vmatpush2.bf16.msra.mxu0 0
  %2280 = vmatprep.subr.bf16.mxu0 0
  %2281 = vmatpush2.bf16.msra.mxu0 0
  %2282 = vmatprep.subr.bf16.mxu0 0
  %2283 = vmatpush2.bf16.msra.mxu0 0
  %2284 = vmatprep.subr.bf16.mxu0 0
  %2285 = vmatpush2.bf16.msra.mxu0 0
  %2286 = vmatprep.subr.bf16.mxu0 0
  %2287 = vmatpush2.bf16.msra.mxu0 0
  %2288 = vmatprep.subr.bf16.mxu0 0
  %2289 = vmatpush2.bf16.msra.mxu0 0
  %2290 = vmatprep.subr.bf16.mxu0 0
  %2291 = vmatpush2.bf16.msra.mxu0 0
  %2292 = vmatprep.subr.bf16.mxu0 0
  %2293 = vmatpush2.bf16.msra.mxu0 %v2249
  %2294 = vmatprep.mubr.bf16.mxu0 %v2260
  %2295 = vmatmul.mubr.bf16.gmra.mxu0 %v1593
  %v2296 = vpop.f32.mrf.mxu0
  %v2297 = vadd.f32 0.0, %v2296
  %v2298 = vpop.f32.mrf.mxu0
  %v2299 = vpop.f32.mrf.mxu0
  %v2300 = vadd.f32 0.0, %v2299
  %v2301 = vpop.f32.mrf.mxu0
  %2302 = vdwg.mxu0
  %v2303 = vadd.f32 %v2184, %v2297
  %v2304 = vadd.f32 %v2185, %v2300
  %v2305 = vld [vmem:[%s6 + $0x2] sm:$0x1]
  %v2307 = vlaneseq
  %v2308 = vshrl.u32 %v2307, 7
  %v2309 = vsub.s32 0, %v2308
  %v2310 = vrot.slane %v2305, %v2309
  %v2312 = vadd.f32 %v2303, %v2310
  %v2313 = vadd.f32 %v2304, %v2310
  %v2314 = vpack.c.bf16 %v2313, %v2312
  %v2315 = vmul.bf16 %v2314, 1056980736
  %v2316 = vmul.bf16 %v2314, 1027030327
  %v2317 = vmul.bf16 %v2316, %v2314
  %v2318 = vmul.bf16 %v2317, %v2314
  %v2319 = vadd.bf16 %v2314, %v2318
  %v2320 = vmul.bf16 %v2319, 1061961548
  %v2321 = vtanh.bf16.pop %v2320
  %v2322 = vadd.bf16 %v2321, 1065369472
  %v2323 = vmul.bf16 %v2315, %v2322
  %v2324 = vld [vmem:[%s3] sm:$0xf]
  %v2325 = vld [vmem:[%s3 + $0x4] sm:$0xf]
  %v2326 = vld [vmem:[%s3 + $0x8] sm:$0xf]
  %v2327 = vld [vmem:[%s3 + $0xc] sm:$0xf]
  %v2328 = vld [vmem:[%s3 + $0x10] sm:$0xf]
  %v2329 = vld [vmem:[%s3 + $0x14] sm:$0xf]
  %v2330 = vld [vmem:[%s3 + $0x18] sm:$0xf]
  %v2331 = vld [vmem:[%s3 + $0x1c] sm:$0xf]
  %v2332 = vld [vmem:[%s3 + $0x20] sm:$0xf]
  %v2333 = vld [vmem:[%s3 + $0x24] sm:$0xf]
  %v2334 = vld [vmem:[%s3 + $0x28] sm:$0xf]
  %v2335 = vld [vmem:[%s3 + $0x2c] sm:$0xf]
  %v2336 = vld [vmem:[%s3 + $0x30] sm:$0xf]
  %v2337 = vld [vmem:[%s3 + $0x34] sm:$0xf]
  %v2338 = vld [vmem:[%s3 + $0x38] sm:$0xf]
  %v2339 = vld [vmem:[%s3 + $0x3c] sm:$0xf]
  %v2340 = vld [vmem:[%s6 + $0x3] sm:$0x1]
  %v2342 = vlaneseq
  %v2343 = vshrl.u32 %v2342, 7
  %v2344 = vsub.s32 0, %v2343
  %v2345 = vrot.slane %v2340, %v2344
  %v2363 = vunpack.c.l.b16 %v2324
  %v2364 = vunpack.c.l.b16 %v2325
  %v2365 = vunpack.c.l.b16 %v2326
  %v2366 = vunpack.c.l.b16 %v2327
  %v2367 = vunpack.c.l.b16 %v2328
  %v2368 = vunpack.c.l.b16 %v2329
  %v2369 = vunpack.c.l.b16 %v2330
  %v2370 = vunpack.c.l.b16 %v2331
  %v2371 = vunpack.c.l.b16 %v2332
  %v2372 = vunpack.c.l.b16 %v2333
  %v2373 = vunpack.c.l.b16 %v2334
  %v2374 = vunpack.c.l.b16 %v2335
  %v2375 = vunpack.c.l.b16 %v2336
  %v2376 = vunpack.c.l.b16 %v2337
  %v2377 = vunpack.c.l.b16 %v2338
  %v2378 = vunpack.c.l.b16 %v2339
  %v2379 = vpack.c.b16 %v2364, %v2363
  %v2380 = vpack.c.b16 %v2366, %v2365
  %v2381 = vpack.c.b16 %v2368, %v2367
  %v2382 = vpack.c.b16 %v2370, %v2369
  %v2383 = vpack.c.b16 %v2372, %v2371
  %v2384 = vpack.c.b16 %v2374, %v2373
  %v2385 = vpack.c.b16 %v2376, %v2375
  %v2386 = vpack.c.b16 %v2378, %v2377
  %2395 = vmatprep.subr.bf16.mxu0 0
  %2396 = vmatpush1.bf16.msra.mxu0 %v2386
  %2397 = vmatprep.subr.bf16.mxu0 0
  %2398 = vmatpush1.bf16.msra.mxu0 %v2385
  %2399 = vmatprep.subr.bf16.mxu0 0
  %2400 = vmatpush1.bf16.msra.mxu0 %v2384
  %2401 = vmatprep.subr.bf16.mxu0 0
  %2402 = vmatpush1.bf16.msra.mxu0 %v2383
  %2403 = vmatprep.subr.bf16.mxu0 0
  %2404 = vmatpush1.bf16.msra.mxu0 %v2382
  %2405 = vmatprep.subr.bf16.mxu0 0
  %2406 = vmatpush1.bf16.msra.mxu0 %v2381
  %2407 = vmatprep.subr.bf16.mxu0 0
  %2408 = vmatpush1.bf16.msra.mxu0 %v2380
  %2409 = vmatprep.subr.bf16.mxu0 0
  %2410 = vmatpush1.bf16.msra.mxu0 %v2379
  %2411 = vmatprep.subr.bf16.mxu0 0
  %2412 = vmatpush2.bf16.msra.mxu0 0
  %2413 = vmatprep.subr.bf16.mxu0 0
  %2414 = vmatpush2.bf16.msra.mxu0 0
  %2415 = vmatprep.subr.bf16.mxu0 0
  %2416 = vmatpush2.bf16.msra.mxu0 0
  %2417 = vmatprep.subr.bf16.mxu0 0
  %2418 = vmatpush2.bf16.msra.mxu0 0
  %2419 = vmatprep.subr.bf16.mxu0 0
  %2420 = vmatpush2.bf16.msra.mxu0 0
  %2421 = vmatprep.subr.bf16.mxu0 0
  %2422 = vmatpush2.bf16.msra.mxu0 0
  %2423 = vmatprep.subr.bf16.mxu0 0
  %2424 = vmatpush2.bf16.msra.mxu0 0
  %2425 = vmatprep.subr.bf16.mxu0 0
  %2426 = vmatpush2.bf16.msra.mxu0 0
  %2427 = vmatprep.mubr.bf16.mxu0 0
  %2428 = vmatmul.mubr.bf16.gmra.mxu0 %v2323
  %v2429 = vpop.f32.mrf.mxu0
  %v2430 = vadd.f32 %v2345, %v2429
  %v2431 = vpop.f32.mrf.mxu0
  %v2432 = vpop.f32.mrf.mxu0
  %v2433 = vadd.f32 %v2345, %v2432
  %v2434 = vpop.f32.mrf.mxu0
  %2435 = vdwg.mxu0
  %v2436 = vpack.c.bf16 %v2433, %v2430
  %v2437 = vmul.bf16 %v2436, 1056980736
  %v2438 = vmul.bf16 %v2436, 1027030327
  %v2439 = vmul.bf16 %v2438, %v2436
  %v2440 = vmul.bf16 %v2439, %v2436
  %v2441 = vadd.bf16 %v2436, %v2440
  %v2442 = vmul.bf16 %v2441, 1061961548
  %v2443 = vtanh.bf16.pop %v2442
  %v2444 = vadd.bf16 %v2443, 1065369472
  %v2445 = vmul.bf16 %v2437, %v2444
  %v2446 = vld [vmem:[%s4] sm:$0xf]
  %v2447 = vld [vmem:[%s4 + $0x4] sm:$0xf]
  %v2448 = vld [vmem:[%s4 + $0x8] sm:$0xf]
  %v2449 = vld [vmem:[%s4 + $0xc] sm:$0xf]
  %v2450 = vld [vmem:[%s4 + $0x10] sm:$0xf]
  %v2451 = vld [vmem:[%s4 + $0x14] sm:$0xf]
  %v2452 = vld [vmem:[%s4 + $0x18] sm:$0xf]
  %v2453 = vld [vmem:[%s4 + $0x1c] sm:$0xf]
  %v2454 = vld [vmem:[%s4 + $0x20] sm:$0xf]
  %v2455 = vld [vmem:[%s4 + $0x24] sm:$0xf]
  %v2456 = vld [vmem:[%s4 + $0x28] sm:$0xf]
  %v2457 = vld [vmem:[%s4 + $0x2c] sm:$0xf]
  %v2458 = vld [vmem:[%s4 + $0x30] sm:$0xf]
  %v2459 = vld [vmem:[%s4 + $0x34] sm:$0xf]
  %v2460 = vld [vmem:[%s4 + $0x38] sm:$0xf]
  %v2461 = vld [vmem:[%s4 + $0x3c] sm:$0xf]
  %v2462 = vld [vmem:[%s6 + $0x4] sm:$0x1]
  %v2464 = vlaneseq
  %v2465 = vshrl.u32 %v2464, 7
  %v2466 = vsub.s32 0, %v2465
  %v2467 = vrot.slane %v2462, %v2466
  %v2485 = vunpack.c.l.b16 %v2446
  %v2486 = vunpack.c.l.b16 %v2447
  %v2487 = vunpack.c.l.b16 %v2448
  %v2488 = vunpack.c.l.b16 %v2449
  %v2489 = vunpack.c.l.b16 %v2450
  %v2490 = vunpack.c.l.b16 %v2451
  %v2491 = vunpack.c.l.b16 %v2452
  %v2492 = vunpack.c.l.b16 %v2453
  %v2493 = vunpack.c.l.b16 %v2454
  %v2494 = vunpack.c.l.b16 %v2455
  %v2495 = vunpack.c.l.b16 %v2456
  %v2496 = vunpack.c.l.b16 %v2457
  %v2497 = vunpack.c.l.b16 %v2458
  %v2498 = vunpack.c.l.b16 %v2459
  %v2499 = vunpack.c.l.b16 %v2460
  %v2500 = vunpack.c.l.b16 %v2461
  %v2501 = vpack.c.b16 %v2486, %v2485
  %v2502 = vpack.c.b16 %v2488, %v2487
  %v2503 = vpack.c.b16 %v2490, %v2489
  %v2504 = vpack.c.b16 %v2492, %v2491
  %v2505 = vpack.c.b16 %v2494, %v2493
  %v2506 = vpack.c.b16 %v2496, %v2495
  %v2507 = vpack.c.b16 %v2498, %v2497
  %v2508 = vpack.c.b16 %v2500, %v2499
  %2517 = vmatprep.subr.bf16.mxu0 0
  %2518 = vmatpush1.bf16.msra.mxu0 %v2508
  %2519 = vmatprep.subr.bf16.mxu0 0
  %2520 = vmatpush1.bf16.msra.mxu0 %v2507
  %2521 = vmatprep.subr.bf16.mxu0 0
  %2522 = vmatpush1.bf16.msra.mxu0 %v2506
  %2523 = vmatprep.subr.bf16.mxu0 0
  %2524 = vmatpush1.bf16.msra.mxu0 %v2505
  %2525 = vmatprep.subr.bf16.mxu0 0
  %2526 = vmatpush1.bf16.msra.mxu0 %v2504
  %2527 = vmatprep.subr.bf16.mxu0 0
  %2528 = vmatpush1.bf16.msra.mxu0 %v2503
  %2529 = vmatprep.subr.bf16.mxu0 0
  %2530 = vmatpush1.bf16.msra.mxu0 %v2502
  %2531 = vmatprep.subr.bf16.mxu0 0
  %2532 = vmatpush1.bf16.msra.mxu0 %v2501
  %2533 = vmatprep.subr.bf16.mxu0 0
  %2534 = vmatpush2.bf16.msra.mxu0 0
  %2535 = vmatprep.subr.bf16.mxu0 0
  %2536 = vmatpush2.bf16.msra.mxu0 0
  %2537 = vmatprep.subr.bf16.mxu0 0
  %2538 = vmatpush2.bf16.msra.mxu0 0
  %2539 = vmatprep.subr.bf16.mxu0 0
  %2540 = vmatpush2.bf16.msra.mxu0 0
  %2541 = vmatprep.subr.bf16.mxu0 0
  %2542 = vmatpush2.bf16.msra.mxu0 0
  %2543 = vmatprep.subr.bf16.mxu0 0
  %2544 = vmatpush2.bf16.msra.mxu0 0
  %2545 = vmatprep.subr.bf16.mxu0 0
  %2546 = vmatpush2.bf16.msra.mxu0 0
  %2547 = vmatprep.subr.bf16.mxu0 0
  %2548 = vmatpush2.bf16.msra.mxu0 0
  %2549 = vmatprep.mubr.bf16.mxu0 0
  %2550 = vmatmul.mubr.bf16.gmra.mxu0 %v2445
  %v2551 = vpop.f32.mrf.mxu0
  %v2552 = vadd.f32 %v2467, %v2551
  %v2553 = vpop.f32.mrf.mxu0
  %v2554 = vpop.f32.mrf.mxu0
  %v2555 = vadd.f32 %v2467, %v2554
  %v2556 = vpop.f32.mrf.mxu0
  %2557 = vdwg.mxu0
  %v2558 = vmul.f32 %v2552, 0.5
  %v2559 = vmul.f32 %v2555, 0.5
  %v2560 = vmul.f32 %v2552, 0.044715
  %v2561 = vmul.f32 %v2555, 0.044715
  %v2562 = vmul.f32 %v2560, %v2552
  %v2563 = vmul.f32 %v2561, %v2555
  %v2564 = vmul.f32 %v2562, %v2552
  %v2565 = vmul.f32 %v2563, %v2555
  %v2566 = vadd.f32 %v2552, %v2564
  %v2567 = vadd.f32 %v2555, %v2565
  %v2568 = vmul.f32 %v2566, 0.7978846
  %v2569 = vmul.f32 %v2567, 0.7978846
  %v2570 = vtanh.pop %v2568
  %v2571 = vtanh.pop %v2569
  %v2572 = vadd.f32 %v2570, 1.0
  %v2573 = vadd.f32 %v2571, 1.0
  %v2574 = vmul.f32 %v2558, %v2572
  %v2575 = vmul.f32 %v2559, %v2573
  %v2576 = vld [vmem:[%s5] sm:$0x1]
  %v2578 = vsel %vm253, %v2576, 0
  %v2581 = vsel %vm253, %v2574, 0
  %v2584 = vsel %vm253, %v2575, 0
  %2586 = vmatprep.subr.mxu0 0.0
  %2587 = vmatpush1.xpose.msra.mxu0 0.0
  %2588 = vmatprep.subr.mxu0 0.0
  %2589 = vmatpush1.xpose.msra.mxu0 0.0
  %2590 = vmatprep.subr.mxu0 0.0
  %2591 = vmatpush1.xpose.msra.mxu0 0.0
  %2592 = vmatprep.subr.mxu0 0.0
  %2593 = vmatpush1.xpose.msra.mxu0 0.0
  %2594 = vmatprep.subr.mxu0 0.0
  %2595 = vmatpush1.xpose.msra.mxu0 0.0
  %2596 = vmatprep.subr.mxu0 0.0
  %2597 = vmatpush1.xpose.msra.mxu0 0.0
  %2598 = vmatprep.subr.mxu0 0.0
  %2599 = vmatpush1.xpose.msra.mxu0 0.0
  %2600 = vmatprep.subr.mxu0 0.0
  %2601 = vmatpush1.xpose.msra.mxu0 0.0
  %2602 = vmatprep.subr.mxu0 0.0
  %2603 = vmatpush1.xpose.msra.mxu0 0.0
  %2604 = vmatprep.subr.mxu0 0.0
  %2605 = vmatpush1.xpose.msra.mxu0 0.0
  %2606 = vmatprep.subr.mxu0 0.0
  %2607 = vmatpush1.xpose.msra.mxu0 0.0
  %2608 = vmatprep.subr.mxu0 0.0
  %2609 = vmatpush1.xpose.msra.mxu0 0.0
  %2610 = vmatprep.subr.mxu0 0.0
  %2611 = vmatpush1.xpose.msra.mxu0 0.0
  %2612 = vmatprep.subr.mxu0 0.0
  %2613 = vmatpush1.xpose.msra.mxu0 0.0
  %2614 = vmatprep.subr.mxu0 0.0
  %2615 = vmatpush1.xpose.msra.mxu0 %v2584
  %2616 = vmatprep.subr.mxu0 0.0
  %2617 = vmatpush1.xpose.msra.mxu0 %v2581
  %2618 = vmatprep.subr.mxu0 0.0
  %2619 = vmatpush2.xpose.msra.mxu0 0.0
  %2620 = vmatprep.subr.mxu0 0.0
  %2621 = vmatpush2.xpose.msra.mxu0 0.0
  %2622 = vmatprep.subr.mxu0 0.0
  %2623 = vmatpush2.xpose.msra.mxu0 0.0
  %2624 = vmatprep.subr.mxu0 0.0
  %2625 = vmatpush2.xpose.msra.mxu0 0.0
  %2626 = vmatprep.subr.mxu0 0.0
  %2627 = vmatpush2.xpose.msra.mxu0 0.0
  %2628 = vmatprep.subr.mxu0 0.0
  %2629 = vmatpush2.xpose.msra.mxu0 0.0
  %2630 = vmatprep.subr.mxu0 0.0
  %2631 = vmatpush2.xpose.msra.mxu0 0.0
  %2632 = vmatprep.subr.mxu0 0.0
  %2633 = vmatpush2.xpose.msra.mxu0 0.0
  %2634 = vmatprep.subr.mxu0 0.0
  %2635 = vmatpush2.xpose.msra.mxu0 0.0
  %2636 = vmatprep.subr.mxu0 0.0
  %2637 = vmatpush2.xpose.msra.mxu0 0.0
  %2638 = vmatprep.subr.mxu0 0.0
  %2639 = vmatpush2.xpose.msra.mxu0 0.0
  %2640 = vmatprep.subr.mxu0 0.0
  %2641 = vmatpush2.xpose.msra.mxu0 0.0
  %2642 = vmatprep.subr.mxu0 0.0
  %2643 = vmatpush2.xpose.msra.mxu0 0.0
  %2644 = vmatprep.subr.mxu0 0.0
  %2645 = vmatpush2.xpose.msra.mxu0 0.0
  %2646 = vmatprep.subr.mxu0 0.0
  %2647 = vmatpush2.xpose.msra.mxu0 0.0
  %2648 = vmatprep.subr.mxu0 0.0
  %2649 = vmatpush2.xpose.msra.mxu0 0.0
  %2650 = vmatprep.mubr.f32.mxu0 0.0
  %2651 = vmatmul.mubr.f32.gmra.mxu0 %v2578
  %v2652 = vpop.f32.mrf.mxu0
  %v2653 = vadd.f32 0.0, %v2652
  %v2654 = vpop.f32.mrf.mxu0
  %2655 = vdwg.mxu0
  %vm2656 = vcmask 122880
  %2657 = vst.msk [vmem:[%s7] sm:$0x1] %vm2656, %v2653
  // Predicated region
  $region30: #{feature_v3_forward.1} parent=0 // pred_check
    _
  $region31: #{feature_v3_forward.1} parent=0 // pred_check_branch
    %2659 = sbr.rel (0) target = $region33
  $region32: #{feature_v3_forward.1} parent=0 // pred_region
    _
  $region33: #{feature_v3_forward.1} parent=0 // pred_fallthru
    _
  // Predicated region
  $region34: #{feature_v3_forward.1} parent=0 // pred_check
    _
  $region35: #{feature_v3_forward.1} parent=0 // pred_check_branch
    %2661 = sbr.rel (0) target = $region37
  $region36: #{feature_v3_forward.1} parent=0 // pred_region
    _
  $region37: #{feature_v3_forward.1} parent=0 // pred_fallthru
    _

</llo_original>
